<compile_context>
chip_gen: v7x
topology: tpu7x:2x2x1
jax: 0.10.0
libtpu: 0.0.40
codegen_flags: <defaults>
</compile_context>

<pallas_src>
import functools

import jax
import jax.numpy as jnp
from jax.experimental import pallas as pl
from jax.experimental.pallas import tpu as pltpu


def dim_reduction_kernel(x_ref, w1t_ref, res_ref, o_ref, *, num_res):
    """Fused fc1 + ReLU + residual MLP blocks for one row-tile of x.

    x_ref   : (TM, C)               VMEM tile of the input (compute dtype)
    w1t_ref : (C, M)                fc1 weight, already transposed (in, out)
    res_ref : (R, 2, M, M)          residual weights, already transposed (Wa^T, Wb^T)
    o_ref   : (TM, M)               output tile
    """
    x = x_ref[...]
    cdt = x.dtype  # compute dtype fed to the MXU (f32 or bf16)

    # fc1 (bias=False) + ReLU  --> MXU matmul, f32 accumulation, no transpose.
    h = jnp.maximum(
        jnp.dot(x, w1t_ref[...], preferred_element_type=jnp.float32), 0.0
    )

    # residual blocks: h = h + relu(relu(h @ Wa^T) @ Wb^T)
    # (weights are pre-transposed, so contraction is a straight jnp.dot)
    for r in range(num_res):
        wa_t = res_ref[r, 0]
        wb_t = res_ref[r, 1]
        t = jnp.maximum(
            jnp.dot(h.astype(cdt), wa_t, preferred_element_type=jnp.float32), 0.0
        )
        t = jnp.maximum(
            jnp.dot(t.astype(cdt), wb_t, preferred_element_type=jnp.float32), 0.0
        )
        h = h + t

    o_ref[...] = h.astype(o_ref.dtype)


def _num_tensorcores_per_chip():
    """Best-effort query: v7x has 2 TensorCores/chip, v5e/v6e have 1."""
    try:
        kind = jax.devices()[0].device_kind.lower()
    except Exception:  # pragma: no cover - be conservative if query fails
        return 1
    return 2 if "v7" in kind else 1


def _pick_tile_rows(n_rows, n_cores):
    """One row tile per TensorCore; fall back to a single full tile otherwise."""
    if n_cores > 1 and n_rows % n_cores == 0 and (n_rows // n_cores) % 8 == 0:
        return n_rows // n_cores
    return n_rows


def dim_reduction(x, w1, res_w, *, tile_rows=None, use_bf16=False):
    """Pallas wrapper.

    x     : (N, C)        input instances
    w1    : (M, C)        fc1 weight, PyTorch (out, in) layout
    res_w : (R, 2, M, M)  residual weights, PyTorch layout ([r,0]=Wa, [r,1]=Wb)
    returns (N, M)
    """
    N, C = x.shape
    M, C2 = w1.shape
    assert C2 == C
    num_res = res_w.shape[0]

    out_dtype = x.dtype
    compute_dtype = jnp.bfloat16 if use_bf16 else x.dtype

    # Layout plumbing (done once, outside the kernel): pre-transpose the weights
    # so the kernel never materializes an XLU transpose on the critical path.
    xc = x.astype(compute_dtype)
    w1t = jnp.transpose(w1).astype(compute_dtype)                      # (C, M)
    if num_res > 0:
        res_wt = jnp.transpose(res_w, (0, 1, 3, 2)).astype(compute_dtype)
    else:
        # Dummy (never read: kernel loop has zero iterations).
        res_wt = jnp.zeros((1, 2, M, M), dtype=compute_dtype)
    res_blocks = res_wt.shape[0]

    # Generation-aware row tiling (grid=1 on single-TC chips, grid=2 on v7x).
    if tile_rows is None:
        tile_rows = _pick_tile_rows(N, _num_tensorcores_per_chip())
    assert N % tile_rows == 0, "N must be divisible by the row tile size"
    grid = (N // tile_rows,)

    flops = 2 * N * (C * M + 2 * num_res * M * M)
    bytes_accessed = (
        xc.size * xc.dtype.itemsize
        + w1t.size * w1t.dtype.itemsize
        + res_wt.size * res_wt.dtype.itemsize
        + N * M * jnp.dtype(out_dtype).itemsize
    )

    kernel = functools.partial(dim_reduction_kernel, num_res=num_res)

    return pl.pallas_call(
        kernel,
        out_shape=jax.ShapeDtypeStruct((N, M), out_dtype),
        grid=grid,
        in_specs=[
            pl.BlockSpec((tile_rows, C), lambda i: (i, 0)),                 # x row tile
            pl.BlockSpec((C, M), lambda i: (0, 0)),                         # fc1^T (resident)
            pl.BlockSpec((res_blocks, 2, M, M), lambda i: (0, 0, 0, 0)),    # res weights (resident)
        ],
        out_specs=pl.BlockSpec((tile_rows, M), lambda i: (i, 0)),
        compiler_params=pltpu.CompilerParams(
            dimension_semantics=("parallel",),
        ),
        cost_estimate=pl.CostEstimate(
            flops=flops, transcendentals=0, bytes_accessed=bytes_accessed
        ),
    )(xc, w1t, res_wt)


def dim_reduction_ref(x, w1, res_w):
    """Pure-JAX reference (mirrors the PyTorch forward)."""
    h = jnp.maximum(x @ w1.T, 0.0)
    for r in range(res_w.shape[0]):
        wa, wb = res_w[r, 0], res_w[r, 1]
        t = jnp.maximum(h @ wa.T, 0.0)
        t = jnp.maximum(t @ wb.T, 0.0)
        h = h + t
    return h


if __name__ == "__main__":
    # Module config: DimReduction(n_channels=64, m_dim=128, numLayer_Res=2)
    N = 256          # number of instances (rows of x)
    C = 64           # n_channels
    M = 128          # m_dim
    NUM_RES = 2      # numLayer_Res

    key = jax.random.PRNGKey(0)
    kx, kw1, kres = jax.random.split(key, 3)

    x = jax.random.normal(kx, (N, C), dtype=jnp.float32)
    # Deterministic parameter init (synthetic; not a checkpoint load).
    w1 = jax.random.normal(kw1, (M, C), dtype=jnp.float32) * (1.0 / jnp.sqrt(C))
    res_w = jax.random.normal(kres, (NUM_RES, 2, M, M), dtype=jnp.float32) * (1.0 / jnp.sqrt(M))

    ref = dim_reduction_ref(x, w1, res_w)

    # f32 path (exact semantics of the PyTorch module).
    out = jax.block_until_ready(dim_reduction(x, w1, res_w))
    assert out.shape == (N, M)
    assert jnp.allclose(out, ref, atol=1e-4, rtol=1e-4), "f32 mismatch vs reference"

    # Optional bf16-operand path (f32 MXU accumulation) — looser tolerance.
    out_bf16 = jax.block_until_ready(dim_reduction(x, w1, res_w, use_bf16=True))
    assert out_bf16.shape == (N, M)
    assert jnp.allclose(out_bf16, ref, atol=0.5, rtol=0.05), "bf16 mismatch vs reference"

    print("KERNEL_OK")
</pallas_src>

<mosaic_0001>
module attributes {stable_mosaic.version = 11 : i64} {
  func.func @dim_reduction_kernel(%arg0: i32, %arg1: memref<256x64xf32, #tpu.memory_space<vmem>>, %arg2: memref<64x128xf32, #tpu.memory_space<vmem>>, %arg3: memref<2x2x128x128xf32, #tpu.memory_space<vmem>>, %arg4: memref<256x128xf32, #tpu.memory_space<vmem>>) attributes {dimension_semantics = [#tpu.dimension_semantics<parallel>], iteration_bounds = array<i64: 1>, scalar_prefetch = 0 : i64, scratch_operands = 0 : i64, tpu.core_type = #tpu.core_type<tc>, window_params = [{transform_indices = @transform_0, window_bounds = array<i64: 256, 64>}, {pipeline_mode = #tpu.pipeline_mode<synchronous>, transform_indices = @transform_1, window_bounds = array<i64: 64, 128>}, {pipeline_mode = #tpu.pipeline_mode<synchronous>, transform_indices = @transform_2, window_bounds = array<i64: 2, 2, 128, 128>}, {transform_indices = @transform_3, window_bounds = array<i64: 256, 128>}]} {
    %c0 = arith.constant 0 : index
    %c0_0 = arith.constant 0 : index
    %0 = vector.load %arg1[%c0, %c0_0] : memref<256x64xf32, #tpu.memory_space<vmem>>, vector<256x64xf32>
    %c0_1 = arith.constant 0 : index
    %c0_2 = arith.constant 0 : index
    %1 = vector.load %arg2[%c0_1, %c0_2] : memref<64x128xf32, #tpu.memory_space<vmem>>, vector<64x128xf32>
    %cst = arith.constant dense<0.000000e+00> : vector<256x128xf32>
    %2 = tpu.matmul %0, %1, %cst {dimension_numbers = #tpu.dot_dimension_numbers<[1], [0], [0], [1], [0, 0, 1, 1], [], []>} : vector<256x64xf32>, vector<64x128xf32>, vector<256x128xf32> -> vector<256x128xf32>
    %cst_3 = arith.constant 0.000000e+00 : f32
    %3 = vector.broadcast %cst_3 : f32 to vector<256x128xf32>
    %4 = arith.maximumf %2, %3 : vector<256x128xf32>
    %c0_4 = arith.constant 0 : index
    %c0_5 = arith.constant 0 : index
    %c0_6 = arith.constant 0 : index
    %c0_7 = arith.constant 0 : index
    %5 = vector.load %arg3[%c0_4, %c0_5, %c0_6, %c0_7] : memref<2x2x128x128xf32, #tpu.memory_space<vmem>>, vector<1x1x128x128xf32>
    %6 = vector.shape_cast %5 : vector<1x1x128x128xf32> to vector<128x128xf32>
    %c0_8 = arith.constant 0 : index
    %c1 = arith.constant 1 : index
    %c0_9 = arith.constant 0 : index
    %c0_10 = arith.constant 0 : index
    %7 = vector.load %arg3[%c0_8, %c1, %c0_9, %c0_10] : memref<2x2x128x128xf32, #tpu.memory_space<vmem>>, vector<1x1x128x128xf32>
    %8 = vector.shape_cast %7 : vector<1x1x128x128xf32> to vector<128x128xf32>
    %cst_11 = arith.constant dense<0.000000e+00> : vector<256x128xf32>
    %9 = tpu.matmul %4, %6, %cst_11 {dimension_numbers = #tpu.dot_dimension_numbers<[1], [0], [0], [1], [0, 0, 1, 1], [], []>} : vector<256x128xf32>, vector<128x128xf32>, vector<256x128xf32> -> vector<256x128xf32>
    %cst_12 = arith.constant 0.000000e+00 : f32
    %10 = vector.broadcast %cst_12 : f32 to vector<256x128xf32>
    %11 = arith.maximumf %9, %10 : vector<256x128xf32>
    %cst_13 = arith.constant dense<0.000000e+00> : vector<256x128xf32>
    %12 = tpu.matmul %11, %8, %cst_13 {dimension_numbers = #tpu.dot_dimension_numbers<[1], [0], [0], [1], [0, 0, 1, 1], [], []>} : vector<256x128xf32>, vector<128x128xf32>, vector<256x128xf32> -> vector<256x128xf32>
    %cst_14 = arith.constant 0.000000e+00 : f32
    %13 = vector.broadcast %cst_14 : f32 to vector<256x128xf32>
    %14 = arith.maximumf %12, %13 : vector<256x128xf32>
    %15 = arith.addf %4, %14 : vector<256x128xf32>
    %c1_15 = arith.constant 1 : index
    %c0_16 = arith.constant 0 : index
    %c0_17 = arith.constant 0 : index
    %c0_18 = arith.constant 0 : index
    %16 = vector.load %arg3[%c1_15, %c0_16, %c0_17, %c0_18] : memref<2x2x128x128xf32, #tpu.memory_space<vmem>>, vector<1x1x128x128xf32>
    %17 = vector.shape_cast %16 : vector<1x1x128x128xf32> to vector<128x128xf32>
    %c1_19 = arith.constant 1 : index
    %c1_20 = arith.constant 1 : index
    %c0_21 = arith.constant 0 : index
    %c0_22 = arith.constant 0 : index
    %18 = vector.load %arg3[%c1_19, %c1_20, %c0_21, %c0_22] : memref<2x2x128x128xf32, #tpu.memory_space<vmem>>, vector<1x1x128x128xf32>
    %19 = vector.shape_cast %18 : vector<1x1x128x128xf32> to vector<128x128xf32>
    %cst_23 = arith.constant dense<0.000000e+00> : vector<256x128xf32>
    %20 = tpu.matmul %15, %17, %cst_23 {dimension_numbers = #tpu.dot_dimension_numbers<[1], [0], [0], [1], [0, 0, 1, 1], [], []>} : vector<256x128xf32>, vector<128x128xf32>, vector<256x128xf32> -> vector<256x128xf32>
    %cst_24 = arith.constant 0.000000e+00 : f32
    %21 = vector.broadcast %cst_24 : f32 to vector<256x128xf32>
    %22 = arith.maximumf %20, %21 : vector<256x128xf32>
    %cst_25 = arith.constant dense<0.000000e+00> : vector<256x128xf32>
    %23 = tpu.matmul %22, %19, %cst_25 {dimension_numbers = #tpu.dot_dimension_numbers<[1], [0], [0], [1], [0, 0, 1, 1], [], []>} : vector<256x128xf32>, vector<128x128xf32>, vector<256x128xf32> -> vector<256x128xf32>
    %cst_26 = arith.constant 0.000000e+00 : f32
    %24 = vector.broadcast %cst_26 : f32 to vector<256x128xf32>
    %25 = arith.maximumf %23, %24 : vector<256x128xf32>
    %26 = arith.addf %15, %25 : vector<256x128xf32>
    %c0_27 = arith.constant 0 : index
    %c0_28 = arith.constant 0 : index
    %27 = vector.load %arg4[%c0_27, %c0_28] : memref<256x128xf32, #tpu.memory_space<vmem>>, vector<256x128xf32>
    tpu.vector_store %arg4[%c0_27, %c0_28], %26 {strides = array<i32>} : memref<256x128xf32, #tpu.memory_space<vmem>>, vector<256x128xf32>,
    return
  }
  func.func @transform_0(%arg0: i32) -> (i32, i32) {
    %c0_i32 = arith.constant 0 : i32
    %c0_i32_0 = arith.constant 0 : i32
    return %arg0, %c0_i32 : i32, i32
  }
  func.func @transform_1(%arg0: i32) -> (i32, i32) {
    %c0_i32 = arith.constant 0 : i32
    %c0_i32_0 = arith.constant 0 : i32
    %c0_i32_1 = arith.constant 0 : i32
    return %c0_i32, %c0_i32_0 : i32, i32
  }
  func.func @transform_2(%arg0: i32) -> (i32, i32, i32, i32) {
    %c0_i32 = arith.constant 0 : i32
    %c0_i32_0 = arith.constant 0 : i32
    %c0_i32_1 = arith.constant 0 : i32
    %c0_i32_2 = arith.constant 0 : i32
    %c0_i32_3 = arith.constant 0 : i32
    return %c0_i32, %c0_i32_0, %c0_i32_1, %c0_i32_2 : i32, i32, i32, i32
  }
  func.func @transform_3(%arg0: i32) -> (i32, i32) {
    %c0_i32 = arith.constant 0 : i32
    %c0_i32_0 = arith.constant 0 : i32
    return %arg0, %c0_i32 : i32, i32
  }
}

</mosaic_0001>

<llo_original>
// kernel: tpu_custom_call.1
$region0: #{tpu_custom_call.1}
  #allocation0 [shape = 'u32[]', space=smem, size = 0x4, offset = 0x4, fixed_abs, tag = 'smem constant byte address 0x4 - core index']
  #allocation1 [shape = 'u32[144,128]{1,0:T(1,128)}', space=vmem, size = 0x12000, scoped, tag = 'internal scratch']
  %s0 = inlined_call_operand.vmem [shape: f32[256,64], index: 0, kind: input, shape index: {}]
  %s1 = inlined_call_operand.vmem [shape: f32[64,128], index: 1, kind: input, shape index: {}]
  %s2 = inlined_call_operand.hbm [shape: f32[2,2,128,128], index: 2, kind: input, shape index: {}]
  %s3 = inlined_call_operand.hbm [shape: f32[256,128], index: 3, kind: output, shape index: {}]
  %s4 = sld [smem:[#allocation0]]
  $region26: #{tpu_custom_call.1} parent=0
    _
  %s6 = ssub.s32 1, %s4
  %s7 = scalar_select 0, %s6, %s4
  $region1: #{tpu_custom_call.1} parent=0
    #allocation2 [shape = 'u8[262144]{0}', space=vmem, size = 0x40000, scoped, tag = 'input window, operand 2, single buffered']
    #allocation3 [shape = 's32[1]{0}', space=sflag, size = 0x4, scoped, tag = 'scoped memory for tpu_custom_call.1']
    #allocation4 [shape = 's32[1]{0}', space=sflag, size = 0x4, scoped, tag = 'scoped memory for tpu_custom_call.1']
    #allocation5 [shape = 'u8[131072]{0}', space=vmem, size = 0x20000, scoped, tag = 'output window, operand 0, single buffered']
    %8 = vsyncpa [#allocation3], 0
    %9 = vsyncpa [#allocation4], 0
    // Predicated region
    $region2: #{tpu_custom_call.1} parent=1 // pred_check
      _
    $region3: #{tpu_custom_call.1} parent=1 // pred_check_branch
      %11 = sbr.rel (0) target = $region5
    $region4: #{tpu_custom_call.1} parent=1 // pred_region
      _
    $region5: #{tpu_custom_call.1} parent=1 // pred_fallthru
      _
    // Predicated region
    $region6: #{tpu_custom_call.1} parent=1 // pred_check
      _
    $region7: #{tpu_custom_call.1} parent=1 // pred_check_branch
      %13 = sbr.rel (0) target = $region9
    $region8: #{tpu_custom_call.1} parent=1 // pred_region
      _
    $region9: #{tpu_custom_call.1} parent=1 // pred_fallthru
      _
    // Predicated region
    $region10: #{tpu_custom_call.1} parent=1 // pred_check
      _
    $region11: #{tpu_custom_call.1} parent=1 // pred_check_branch
      %15 = sbr.rel (0) target = $region13
    $region12: #{tpu_custom_call.1} parent=1 // pred_region
      %s17 = ssub.s32 8192, 8192
      %18 = vsyncadd [#allocation3], %s17
      %s19 = sshll.u32 [#allocation2], 4
      %s20 = int_to_ptr.vmem [resolvable:$true] %s19
      %25 = dma.hbm_to_vmem [thread:$0]  %s2, 8192, %s20, [#allocation3], 128, 128, 8
    $region13: #{tpu_custom_call.1} parent=1 // pred_fallthru
      _
    // Predicated region
    $region14: #{tpu_custom_call.1} parent=1 // pred_check
      _
    $region15: #{tpu_custom_call.1} parent=1 // pred_check_branch
      %27 = sbr.rel (0) target = $region17
    $region16: #{tpu_custom_call.1} parent=1 // pred_region
      %28 = dma.done [#allocation3], 8192
    $region17: #{tpu_custom_call.1} parent=1 // pred_fallthru
      _
    %v29 = vld [vmem:[%s0] sm:$0xff]
    %v30 = vld [vmem:[%s0 + $0x8] sm:$0xff]
    %v31 = vld [vmem:[%s0 + $0x10] sm:$0xff]
    %v32 = vld [vmem:[%s0 + $0x18] sm:$0xff]
    %v33 = vld [vmem:[%s0 + $0x20] sm:$0xff]
    %v34 = vld [vmem:[%s0 + $0x28] sm:$0xff]
    %v35 = vld [vmem:[%s0 + $0x30] sm:$0xff]
    %v36 = vld [vmem:[%s0 + $0x38] sm:$0xff]
    %v37 = vld [vmem:[%s0 + $0x40] sm:$0xff]
    %v38 = vld [vmem:[%s0 + $0x48] sm:$0xff]
    %v39 = vld [vmem:[%s0 + $0x50] sm:$0xff]
    %v40 = vld [vmem:[%s0 + $0x58] sm:$0xff]
    %v41 = vld [vmem:[%s0 + $0x60] sm:$0xff]
    %v42 = vld [vmem:[%s0 + $0x68] sm:$0xff]
    %v43 = vld [vmem:[%s0 + $0x70] sm:$0xff]
    %v44 = vld [vmem:[%s0 + $0x78] sm:$0xff]
    %v45 = vld [vmem:[%s0 + $0x80] sm:$0xff]
    %v46 = vld [vmem:[%s0 + $0x88] sm:$0xff]
    %v47 = vld [vmem:[%s0 + $0x90] sm:$0xff]
    %v48 = vld [vmem:[%s0 + $0x98] sm:$0xff]
    %v49 = vld [vmem:[%s0 + $0xa0] sm:$0xff]
    %v50 = vld [vmem:[%s0 + $0xa8] sm:$0xff]
    %v51 = vld [vmem:[%s0 + $0xb0] sm:$0xff]
    %v52 = vld [vmem:[%s0 + $0xb8] sm:$0xff]
    %v53 = vld [vmem:[%s0 + $0xc0] sm:$0xff]
    %v54 = vld [vmem:[%s0 + $0xc8] sm:$0xff]
    %v55 = vld [vmem:[%s0 + $0xd0] sm:$0xff]
    %v56 = vld [vmem:[%s0 + $0xd8] sm:$0xff]
    %v57 = vld [vmem:[%s0 + $0xe0] sm:$0xff]
    %v58 = vld [vmem:[%s0 + $0xe8] sm:$0xff]
    %v59 = vld [vmem:[%s0 + $0xf0] sm:$0xff]
    %v60 = vld [vmem:[%s0 + $0xf8] sm:$0xff]
    %v61 = vld [vmem:[%s1] sm:$0xff]
    %v62 = vld [vmem:[%s1 + $0x8] sm:$0xff]
    %v63 = vld [vmem:[%s1 + $0x10] sm:$0xff]
    %v64 = vld [vmem:[%s1 + $0x18] sm:$0xff]
    %v65 = vld [vmem:[%s1 + $0x20] sm:$0xff]
    %v66 = vld [vmem:[%s1 + $0x28] sm:$0xff]
    %v67 = vld [vmem:[%s1 + $0x30] sm:$0xff]
    %v68 = vld [vmem:[%s1 + $0x38] sm:$0xff]
    %vm69 = vcmask 523264
    %v71 = vsel %vm69, %v29, 0
    %v74 = vsel %vm69, %v30, 0
    %v77 = vsel %vm69, %v31, 0
    %v80 = vsel %vm69, %v32, 0
    %v83 = vsel %vm69, %v33, 0
    %v86 = vsel %vm69, %v34, 0
    %v89 = vsel %vm69, %v35, 0
    %v92 = vsel %vm69, %v36, 0
    %v95 = vsel %vm69, %v37, 0
    %v98 = vsel %vm69, %v38, 0
    %v101 = vsel %vm69, %v39, 0
    %v104 = vsel %vm69, %v40, 0
    %v107 = vsel %vm69, %v41, 0
    %v110 = vsel %vm69, %v42, 0
    %v113 = vsel %vm69, %v43, 0
    %v116 = vsel %vm69, %v44, 0
    %v119 = vsel %vm69, %v45, 0
    %v122 = vsel %vm69, %v46, 0
    %v125 = vsel %vm69, %v47, 0
    %v128 = vsel %vm69, %v48, 0
    %v131 = vsel %vm69, %v49, 0
    %v134 = vsel %vm69, %v50, 0
    %v137 = vsel %vm69, %v51, 0
    %v140 = vsel %vm69, %v52, 0
    %v143 = vsel %vm69, %v53, 0
    %v146 = vsel %vm69, %v54, 0
    %v149 = vsel %vm69, %v55, 0
    %v152 = vsel %vm69, %v56, 0
    %v155 = vsel %vm69, %v57, 0
    %v158 = vsel %vm69, %v58, 0
    %v161 = vsel %vm69, %v59, 0
    %v164 = vsel %vm69, %v60, 0
    %166 = vmatprep.subr.mxu0 0.0
    %167 = vmatpush1.msra.mxu0 %v61
    %168 = vmatprep.subr.mxu0 0.0
    %169 = vmatpush1.msra.mxu0 %v62
    %170 = vmatprep.subr.mxu0 0.0
    %171 = vmatpush1.msra.mxu0 %v63
    %172 = vmatprep.subr.mxu0 0.0
    %173 = vmatpush1.msra.mxu0 %v64
    %174 = vmatprep.subr.mxu0 0.0
    %175 = vmatpush1.msra.mxu0 %v65
    %176 = vmatprep.subr.mxu0 0.0
    %177 = vmatpush1.msra.mxu0 %v66
    %178 = vmatprep.subr.mxu0 0.0
    %179 = vmatpush1.msra.mxu0 %v67
    %180 = vmatprep.subr.mxu0 0.0
    %181 = vmatpush1.msra.mxu0 %v68
    %182 = vmatprep.subr.mxu0 0.0
    %183 = vmatpush1.msra.mxu0 0.0
    %184 = vmatprep.subr.mxu0 0.0
    %185 = vmatpush1.msra.mxu0 0.0
    %186 = vmatprep.subr.mxu0 0.0
    %187 = vmatpush1.msra.mxu0 0.0
    %188 = vmatprep.subr.mxu0 0.0
    %189 = vmatpush1.msra.mxu0 0.0
    %190 = vmatprep.subr.mxu0 0.0
    %191 = vmatpush1.msra.mxu0 0.0
    %192 = vmatprep.subr.mxu0 0.0
    %193 = vmatpush1.msra.mxu0 0.0
    %194 = vmatprep.subr.mxu0 0.0
    %195 = vmatpush1.msra.mxu0 0.0
    %196 = vmatprep.subr.mxu0 0.0
    %197 = vmatpush1.msra.mxu0 0.0
    %198 = vmatprep.subr.mxu0 0.0
    %199 = vmatpush1.msra.mxu0 0.0
    %200 = vmatprep.subr.mxu0 0.0
    %201 = vmatpush1.msra.mxu0 0.0
    %202 = vmatprep.subr.mxu0 0.0
    %203 = vmatpush1.msra.mxu0 0.0
    %204 = vmatprep.subr.mxu0 0.0
    %205 = vmatpush1.msra.mxu0 0.0
    %206 = vmatprep.subr.mxu0 0.0
    %207 = vmatpush1.msra.mxu0 0.0
    %208 = vmatprep.subr.mxu0 0.0
    %209 = vmatpush1.msra.mxu0 0.0
    %210 = vmatprep.subr.mxu0 0.0
    %211 = vmatpush1.msra.mxu0 0.0
    %212 = vmatprep.subr.mxu0 0.0
    %213 = vmatpush1.msra.mxu0 0.0
    %214 = vmatprep.subr.mxu0 0.0
    %215 = vmatpush1.msra.mxu0 0.0
    %216 = vmatprep.subr.mxu0 0.0
    %217 = vmatpush1.msra.mxu0 0.0
    %218 = vmatprep.subr.mxu0 0.0
    %219 = vmatpush1.msra.mxu0 0.0
    %220 = vmatprep.subr.mxu0 0.0
    %221 = vmatpush1.msra.mxu0 0.0
    %222 = vmatprep.subr.mxu0 0.0
    %223 = vmatpush1.msra.mxu0 0.0
    %224 = vmatprep.subr.mxu0 0.0
    %225 = vmatpush1.msra.mxu0 0.0
    %226 = vmatprep.subr.mxu0 0.0
    %227 = vmatpush1.msra.mxu0 0.0
    %228 = vmatprep.subr.mxu0 0.0
    %229 = vmatpush1.msra.mxu0 0.0
    %230 = vmatprep.mubr.f32.mxu0 0.0
    %231 = vmatmul.mubr.f32.gmra.mrb[0].mxu0 %v71
    %v232 = vpop.f32.mrb[0].mxu0
    %v233 = vadd.f32 0.0, %v232
    %v234 = vpop.f32.mrb[0].mxu0
    %235 = vmatprep.mubr.f32.mxu0 0.0
    %236 = vmatmul.mubr.f32.gmra.mrb[0].mxu0 %v74
    %v237 = vpop.f32.mrb[0].mxu0
    %v238 = vadd.f32 0.0, %v237
    %v239 = vpop.f32.mrb[0].mxu0
    %240 = vmatprep.mubr.f32.mxu0 0.0
    %241 = vmatmul.mubr.f32.gmra.mrb[0].mxu0 %v77
    %v242 = vpop.f32.mrb[0].mxu0
    %v243 = vadd.f32 0.0, %v242
    %v244 = vpop.f32.mrb[0].mxu0
    %245 = vmatprep.mubr.f32.mxu0 0.0
    %246 = vmatmul.mubr.f32.gmra.mrb[0].mxu0 %v80
    %v247 = vpop.f32.mrb[0].mxu0
    %v248 = vadd.f32 0.0, %v247
    %v249 = vpop.f32.mrb[0].mxu0
    %250 = vmatprep.mubr.f32.mxu0 0.0
    %251 = vmatmul.mubr.f32.gmra.mrb[0].mxu0 %v83
    %v252 = vpop.f32.mrb[0].mxu0
    %v253 = vadd.f32 0.0, %v252
    %v254 = vpop.f32.mrb[0].mxu0
    %255 = vmatprep.mubr.f32.mxu0 0.0
    %256 = vmatmul.mubr.f32.gmra.mrb[0].mxu0 %v86
    %v257 = vpop.f32.mrb[0].mxu0
    %v258 = vadd.f32 0.0, %v257
    %v259 = vpop.f32.mrb[0].mxu0
    %260 = vmatprep.mubr.f32.mxu0 0.0
    %261 = vmatmul.mubr.f32.gmra.mrb[0].mxu0 %v89
    %v262 = vpop.f32.mrb[0].mxu0
    %v263 = vadd.f32 0.0, %v262
    %v264 = vpop.f32.mrb[0].mxu0
    %265 = vmatprep.mubr.f32.mxu0 0.0
    %266 = vmatmul.mubr.f32.gmra.mrb[0].mxu0 %v92
    %v267 = vpop.f32.mrb[0].mxu0
    %v268 = vadd.f32 0.0, %v267
    %v269 = vpop.f32.mrb[0].mxu0
    %270 = vmatprep.mubr.f32.mxu0 0.0
    %271 = vmatmul.mubr.f32.gmra.mrb[0].mxu0 %v95
    %v272 = vpop.f32.mrb[0].mxu0
    %v273 = vadd.f32 0.0, %v272
    %v274 = vpop.f32.mrb[0].mxu0
    %275 = vmatprep.mubr.f32.mxu0 0.0
    %276 = vmatmul.mubr.f32.gmra.mrb[0].mxu0 %v98
    %v277 = vpop.f32.mrb[0].mxu0
    %v278 = vadd.f32 0.0, %v277
    %v279 = vpop.f32.mrb[0].mxu0
    %280 = vmatprep.mubr.f32.mxu0 0.0
    %281 = vmatmul.mubr.f32.gmra.mrb[0].mxu0 %v101
    %v282 = vpop.f32.mrb[0].mxu0
    %v283 = vadd.f32 0.0, %v282
    %v284 = vpop.f32.mrb[0].mxu0
    %285 = vmatprep.mubr.f32.mxu0 0.0
    %286 = vmatmul.mubr.f32.gmra.mrb[0].mxu0 %v104
    %v287 = vpop.f32.mrb[0].mxu0
    %v288 = vadd.f32 0.0, %v287
    %v289 = vpop.f32.mrb[0].mxu0
    %290 = vmatprep.mubr.f32.mxu0 0.0
    %291 = vmatmul.mubr.f32.gmra.mrb[0].mxu0 %v107
    %v292 = vpop.f32.mrb[0].mxu0
    %v293 = vadd.f32 0.0, %v292
    %v294 = vpop.f32.mrb[0].mxu0
    %295 = vmatprep.mubr.f32.mxu0 0.0
    %296 = vmatmul.mubr.f32.gmra.mrb[0].mxu0 %v110
    %v297 = vpop.f32.mrb[0].mxu0
    %v298 = vadd.f32 0.0, %v297
    %v299 = vpop.f32.mrb[0].mxu0
    %300 = vmatprep.mubr.f32.mxu0 0.0
    %301 = vmatmul.mubr.f32.gmra.mrb[0].mxu0 %v113
    %v302 = vpop.f32.mrb[0].mxu0
    %v303 = vadd.f32 0.0, %v302
    %v304 = vpop.f32.mrb[0].mxu0
    %305 = vmatprep.mubr.f32.mxu0 0.0
    %306 = vmatmul.mubr.f32.gmra.mrb[0].mxu0 %v116
    %v307 = vpop.f32.mrb[0].mxu0
    %v308 = vadd.f32 0.0, %v307
    %v309 = vpop.f32.mrb[0].mxu0
    %310 = vmatprep.mubr.f32.mxu0 0.0
    %311 = vmatmul.mubr.f32.gmra.mrb[0].mxu0 %v119
    %v312 = vpop.f32.mrb[0].mxu0
    %v313 = vadd.f32 0.0, %v312
    %v314 = vpop.f32.mrb[0].mxu0
    %315 = vmatprep.mubr.f32.mxu0 0.0
    %316 = vmatmul.mubr.f32.gmra.mrb[0].mxu0 %v122
    %v317 = vpop.f32.mrb[0].mxu0
    %v318 = vadd.f32 0.0, %v317
    %v319 = vpop.f32.mrb[0].mxu0
    %320 = vmatprep.mubr.f32.mxu0 0.0
    %321 = vmatmul.mubr.f32.gmra.mrb[0].mxu0 %v125
    %v322 = vpop.f32.mrb[0].mxu0
    %v323 = vadd.f32 0.0, %v322
    %v324 = vpop.f32.mrb[0].mxu0
    %325 = vmatprep.mubr.f32.mxu0 0.0
    %326 = vmatmul.mubr.f32.gmra.mrb[0].mxu0 %v128
    %v327 = vpop.f32.mrb[0].mxu0
    %v328 = vadd.f32 0.0, %v327
    %v329 = vpop.f32.mrb[0].mxu0
    %330 = vmatprep.mubr.f32.mxu0 0.0
    %331 = vmatmul.mubr.f32.gmra.mrb[0].mxu0 %v131
    %v332 = vpop.f32.mrb[0].mxu0
    %v333 = vadd.f32 0.0, %v332
    %v334 = vpop.f32.mrb[0].mxu0
    %335 = vmatprep.mubr.f32.mxu0 0.0
    %336 = vmatmul.mubr.f32.gmra.mrb[0].mxu0 %v134
    %v337 = vpop.f32.mrb[0].mxu0
    %v338 = vadd.f32 0.0, %v337
    %v339 = vpop.f32.mrb[0].mxu0
    %340 = vmatprep.mubr.f32.mxu0 0.0
    %341 = vmatmul.mubr.f32.gmra.mrb[0].mxu0 %v137
    %v342 = vpop.f32.mrb[0].mxu0
    %v343 = vadd.f32 0.0, %v342
    %v344 = vpop.f32.mrb[0].mxu0
    %345 = vmatprep.mubr.f32.mxu0 0.0
    %346 = vmatmul.mubr.f32.gmra.mrb[0].mxu0 %v140
    %v347 = vpop.f32.mrb[0].mxu0
    %v348 = vadd.f32 0.0, %v347
    %v349 = vpop.f32.mrb[0].mxu0
    %350 = vmatprep.mubr.f32.mxu0 0.0
    %351 = vmatmul.mubr.f32.gmra.mrb[0].mxu0 %v143
    %v352 = vpop.f32.mrb[0].mxu0
    %v353 = vadd.f32 0.0, %v352
    %v354 = vpop.f32.mrb[0].mxu0
    %355 = vmatprep.mubr.f32.mxu0 0.0
    %356 = vmatmul.mubr.f32.gmra.mrb[0].mxu0 %v146
    %v357 = vpop.f32.mrb[0].mxu0
    %v358 = vadd.f32 0.0, %v357
    %v359 = vpop.f32.mrb[0].mxu0
    %360 = vmatprep.mubr.f32.mxu0 0.0
    %361 = vmatmul.mubr.f32.gmra.mrb[0].mxu0 %v149
    %v362 = vpop.f32.mrb[0].mxu0
    %v363 = vadd.f32 0.0, %v362
    %v364 = vpop.f32.mrb[0].mxu0
    %365 = vmatprep.mubr.f32.mxu0 0.0
    %366 = vmatmul.mubr.f32.gmra.mrb[0].mxu0 %v152
    %v367 = vpop.f32.mrb[0].mxu0
    %v368 = vadd.f32 0.0, %v367
    %v369 = vpop.f32.mrb[0].mxu0
    %370 = vmatprep.mubr.f32.mxu0 0.0
    %371 = vmatmul.mubr.f32.gmra.mrb[0].mxu0 %v155
    %v372 = vpop.f32.mrb[0].mxu0
    %v373 = vadd.f32 0.0, %v372
    %v374 = vpop.f32.mrb[0].mxu0
    %375 = vmatprep.mubr.f32.mxu0 0.0
    %376 = vmatmul.mubr.f32.gmra.mrb[0].mxu0 %v158
    %v377 = vpop.f32.mrb[0].mxu0
    %v378 = vadd.f32 0.0, %v377
    %v379 = vpop.f32.mrb[0].mxu0
    %380 = vmatprep.mubr.f32.mxu0 0.0
    %381 = vmatmul.mubr.f32.gmra.mrb[0].mxu0 %v161
    %v382 = vpop.f32.mrb[0].mxu0
    %v383 = vadd.f32 0.0, %v382
    %v384 = vpop.f32.mrb[0].mxu0
    %385 = vmatprep.mubr.f32.mxu0 0.0
    %386 = vmatmul.mubr.f32.gmra.mrb[0].mxu0 %v164
    %v387 = vpop.f32.mrb[0].mxu0
    %v388 = vadd.f32 0.0, %v387
    %v389 = vpop.f32.mrb[0].mxu0
    %390 = vdwg.mxu0
    %v391 = vmax.f32 %v233, 0.0
    %v392 = vmax.f32 %v238, 0.0
    %v393 = vmax.f32 %v243, 0.0
    %v394 = vmax.f32 %v248, 0.0
    %v395 = vmax.f32 %v253, 0.0
    %v396 = vmax.f32 %v258, 0.0
    %v397 = vmax.f32 %v263, 0.0
    %v398 = vmax.f32 %v268, 0.0
    %v399 = vmax.f32 %v273, 0.0
    %v400 = vmax.f32 %v278, 0.0
    %v401 = vmax.f32 %v283, 0.0
    %v402 = vmax.f32 %v288, 0.0
    %v403 = vmax.f32 %v293, 0.0
    %v404 = vmax.f32 %v298, 0.0
    %v405 = vmax.f32 %v303, 0.0
    %v406 = vmax.f32 %v308, 0.0
    %v407 = vmax.f32 %v313, 0.0
    %v408 = vmax.f32 %v318, 0.0
    %v409 = vmax.f32 %v323, 0.0
    %v410 = vmax.f32 %v328, 0.0
    %v411 = vmax.f32 %v333, 0.0
    %v412 = vmax.f32 %v338, 0.0
    %v413 = vmax.f32 %v343, 0.0
    %v414 = vmax.f32 %v348, 0.0
    %v415 = vmax.f32 %v353, 0.0
    %v416 = vmax.f32 %v358, 0.0
    %v417 = vmax.f32 %v363, 0.0
    %v418 = vmax.f32 %v368, 0.0
    %v419 = vmax.f32 %v373, 0.0
    %v420 = vmax.f32 %v378, 0.0
    %v421 = vmax.f32 %v383, 0.0
    %v422 = vmax.f32 %v388, 0.0
    %v423 = vld [vmem:[#allocation2] sm:$0xff]
    %v424 = vld [vmem:[#allocation2 + $0x8] sm:$0xff]
    %v425 = vld [vmem:[#allocation2 + $0x10] sm:$0xff]
    %v426 = vld [vmem:[#allocation2 + $0x18] sm:$0xff]
    %v427 = vld [vmem:[#allocation2 + $0x20] sm:$0xff]
    %v428 = vld [vmem:[#allocation2 + $0x28] sm:$0xff]
    %v429 = vld [vmem:[#allocation2 + $0x30] sm:$0xff]
    %v430 = vld [vmem:[#allocation2 + $0x38] sm:$0xff]
    %v431 = vld [vmem:[#allocation2 + $0x40] sm:$0xff]
    %v432 = vld [vmem:[#allocation2 + $0x48] sm:$0xff]
    %v433 = vld [vmem:[#allocation2 + $0x50] sm:$0xff]
    %v434 = vld [vmem:[#allocation2 + $0x58] sm:$0xff]
    %v435 = vld [vmem:[#allocation2 + $0x60] sm:$0xff]
    %v436 = vld [vmem:[#allocation2 + $0x68] sm:$0xff]
    %v437 = vld [vmem:[#allocation2 + $0x70] sm:$0xff]
    %v438 = vld [vmem:[#allocation2 + $0x78] sm:$0xff]
    %s439 = scalar_lea.vmem [#allocation2], 128
    %v440 = vld [vmem:[%s439] sm:$0xff]
    %v441 = vld [vmem:[%s439 + $0x8] sm:$0xff]
    %v442 = vld [vmem:[%s439 + $0x10] sm:$0xff]
    %v443 = vld [vmem:[%s439 + $0x18] sm:$0xff]
    %v444 = vld [vmem:[%s439 + $0x20] sm:$0xff]
    %v445 = vld [vmem:[%s439 + $0x28] sm:$0xff]
    %v446 = vld [vmem:[%s439 + $0x30] sm:$0xff]
    %v447 = vld [vmem:[%s439 + $0x38] sm:$0xff]
    %v448 = vld [vmem:[%s439 + $0x40] sm:$0xff]
    %v449 = vld [vmem:[%s439 + $0x48] sm:$0xff]
    %v450 = vld [vmem:[%s439 + $0x50] sm:$0xff]
    %v451 = vld [vmem:[%s439 + $0x58] sm:$0xff]
    %v452 = vld [vmem:[%s439 + $0x60] sm:$0xff]
    %v453 = vld [vmem:[%s439 + $0x68] sm:$0xff]
    %v454 = vld [vmem:[%s439 + $0x70] sm:$0xff]
    %v455 = vld [vmem:[%s439 + $0x78] sm:$0xff]
    %456 = vmatprep.subr.mxu0 0.0
    %457 = vmatpush1.msra.mxu0 %v423
    %458 = vmatprep.subr.mxu0 0.0
    %459 = vmatpush1.msra.mxu0 %v424
    %460 = vmatprep.subr.mxu0 0.0
    %461 = vmatpush1.msra.mxu0 %v425
    %462 = vmatprep.subr.mxu0 0.0
    %463 = vmatpush1.msra.mxu0 %v426
    %464 = vmatprep.subr.mxu0 0.0
    %465 = vmatpush1.msra.mxu0 %v427
    %466 = vmatprep.subr.mxu0 0.0
    %467 = vmatpush1.msra.mxu0 %v428
    %468 = vmatprep.subr.mxu0 0.0
    %469 = vmatpush1.msra.mxu0 %v429
    %470 = vmatprep.subr.mxu0 0.0
    %471 = vmatpush1.msra.mxu0 %v430
    %472 = vmatprep.subr.mxu0 0.0
    %473 = vmatpush1.msra.mxu0 %v431
    %474 = vmatprep.subr.mxu0 0.0
    %475 = vmatpush1.msra.mxu0 %v432
    %476 = vmatprep.subr.mxu0 0.0
    %477 = vmatpush1.msra.mxu0 %v433
    %478 = vmatprep.subr.mxu0 0.0
    %479 = vmatpush1.msra.mxu0 %v434
    %480 = vmatprep.subr.mxu0 0.0
    %481 = vmatpush1.msra.mxu0 %v435
    %482 = vmatprep.subr.mxu0 0.0
    %483 = vmatpush1.msra.mxu0 %v436
    %484 = vmatprep.subr.mxu0 0.0
    %485 = vmatpush1.msra.mxu0 %v437
    %486 = vmatprep.subr.mxu0 0.0
    %487 = vmatpush1.msra.mxu0 %v438
    %488 = vmatprep.subr.mxu0 0.0
    %489 = vmatpush1.msra.mxu0 0.0
    %490 = vmatprep.subr.mxu0 0.0
    %491 = vmatpush1.msra.mxu0 0.0
    %492 = vmatprep.subr.mxu0 0.0
    %493 = vmatpush1.msra.mxu0 0.0
    %494 = vmatprep.subr.mxu0 0.0
    %495 = vmatpush1.msra.mxu0 0.0
    %496 = vmatprep.subr.mxu0 0.0
    %497 = vmatpush1.msra.mxu0 0.0
    %498 = vmatprep.subr.mxu0 0.0
    %499 = vmatpush1.msra.mxu0 0.0
    %500 = vmatprep.subr.mxu0 0.0
    %501 = vmatpush1.msra.mxu0 0.0
    %502 = vmatprep.subr.mxu0 0.0
    %503 = vmatpush1.msra.mxu0 0.0
    %504 = vmatprep.subr.mxu0 0.0
    %505 = vmatpush1.msra.mxu0 0.0
    %506 = vmatprep.subr.mxu0 0.0
    %507 = vmatpush1.msra.mxu0 0.0
    %508 = vmatprep.subr.mxu0 0.0
    %509 = vmatpush1.msra.mxu0 0.0
    %510 = vmatprep.subr.mxu0 0.0
    %511 = vmatpush1.msra.mxu0 0.0
    %512 = vmatprep.subr.mxu0 0.0
    %513 = vmatpush1.msra.mxu0 0.0
    %514 = vmatprep.subr.mxu0 0.0
    %515 = vmatpush1.msra.mxu0 0.0
    %516 = vmatprep.subr.mxu0 0.0
    %517 = vmatpush1.msra.mxu0 0.0
    %518 = vmatprep.subr.mxu0 0.0
    %519 = vmatpush1.msra.mxu0 0.0
    %520 = vmatprep.mubr.f32.mxu0 0.0
    %521 = vmatmul.mubr.f32.gmra.mrb[0].mxu0 %v391
    %v522 = vpop.f32.mrb[0].mxu0
    %v523 = vadd.f32 0.0, %v522
    %v524 = vpop.f32.mrb[0].mxu0
    %525 = vmatprep.mubr.f32.mxu0 0.0
    %526 = vmatmul.mubr.f32.gmra.mrb[0].mxu0 %v392
    %v527 = vpop.f32.mrb[0].mxu0
    %v528 = vadd.f32 0.0, %v527
    %v529 = vpop.f32.mrb[0].mxu0
    %530 = vmatprep.mubr.f32.mxu0 0.0
    %531 = vmatmul.mubr.f32.gmra.mrb[0].mxu0 %v393
    %v532 = vpop.f32.mrb[0].mxu0
    %v533 = vadd.f32 0.0, %v532
    %v534 = vpop.f32.mrb[0].mxu0
    %535 = vmatprep.mubr.f32.mxu0 0.0
    %536 = vmatmul.mubr.f32.gmra.mrb[0].mxu0 %v394
    %v537 = vpop.f32.mrb[0].mxu0
    %v538 = vadd.f32 0.0, %v537
    %v539 = vpop.f32.mrb[0].mxu0
    %540 = vmatprep.mubr.f32.mxu0 0.0
    %541 = vmatmul.mubr.f32.gmra.mrb[0].mxu0 %v395
    %v542 = vpop.f32.mrb[0].mxu0
    %v543 = vadd.f32 0.0, %v542
    %v544 = vpop.f32.mrb[0].mxu0
    %545 = vmatprep.mubr.f32.mxu0 0.0
    %546 = vmatmul.mubr.f32.gmra.mrb[0].mxu0 %v396
    %v547 = vpop.f32.mrb[0].mxu0
    %v548 = vadd.f32 0.0, %v547
    %v549 = vpop.f32.mrb[0].mxu0
    %550 = vmatprep.mubr.f32.mxu0 0.0
    %551 = vmatmul.mubr.f32.gmra.mrb[0].mxu0 %v397
    %v552 = vpop.f32.mrb[0].mxu0
    %v553 = vadd.f32 0.0, %v552
    %v554 = vpop.f32.mrb[0].mxu0
    %555 = vmatprep.mubr.f32.mxu0 0.0
    %556 = vmatmul.mubr.f32.gmra.mrb[0].mxu0 %v398
    %v557 = vpop.f32.mrb[0].mxu0
    %v558 = vadd.f32 0.0, %v557
    %v559 = vpop.f32.mrb[0].mxu0
    %560 = vmatprep.mubr.f32.mxu0 0.0
    %561 = vmatmul.mubr.f32.gmra.mrb[0].mxu0 %v399
    %v562 = vpop.f32.mrb[0].mxu0
    %v563 = vadd.f32 0.0, %v562
    %v564 = vpop.f32.mrb[0].mxu0
    %565 = vmatprep.mubr.f32.mxu0 0.0
    %566 = vmatmul.mubr.f32.gmra.mrb[0].mxu0 %v400
    %v567 = vpop.f32.mrb[0].mxu0
    %v568 = vadd.f32 0.0, %v567
    %v569 = vpop.f32.mrb[0].mxu0
    %570 = vmatprep.mubr.f32.mxu0 0.0
    %571 = vmatmul.mubr.f32.gmra.mrb[0].mxu0 %v401
    %v572 = vpop.f32.mrb[0].mxu0
    %v573 = vadd.f32 0.0, %v572
    %v574 = vpop.f32.mrb[0].mxu0
    %575 = vmatprep.mubr.f32.mxu0 0.0
    %576 = vmatmul.mubr.f32.gmra.mrb[0].mxu0 %v402
    %v577 = vpop.f32.mrb[0].mxu0
    %v578 = vadd.f32 0.0, %v577
    %v579 = vpop.f32.mrb[0].mxu0
    %580 = vmatprep.mubr.f32.mxu0 0.0
    %581 = vmatmul.mubr.f32.gmra.mrb[0].mxu0 %v403
    %v582 = vpop.f32.mrb[0].mxu0
    %v583 = vadd.f32 0.0, %v582
    %v584 = vpop.f32.mrb[0].mxu0
    %585 = vmatprep.mubr.f32.mxu0 0.0
    %586 = vmatmul.mubr.f32.gmra.mrb[0].mxu0 %v404
    %v587 = vpop.f32.mrb[0].mxu0
    %v588 = vadd.f32 0.0, %v587
    %v589 = vpop.f32.mrb[0].mxu0
    %590 = vmatprep.mubr.f32.mxu0 0.0
    %591 = vmatmul.mubr.f32.gmra.mrb[0].mxu0 %v405
    %v592 = vpop.f32.mrb[0].mxu0
    %v593 = vadd.f32 0.0, %v592
    %v594 = vpop.f32.mrb[0].mxu0
    %595 = vmatprep.mubr.f32.mxu0 0.0
    %596 = vmatmul.mubr.f32.gmra.mrb[0].mxu0 %v406
    %v597 = vpop.f32.mrb[0].mxu0
    %v598 = vadd.f32 0.0, %v597
    %v599 = vpop.f32.mrb[0].mxu0
    %600 = vmatprep.mubr.f32.mxu0 0.0
    %601 = vmatmul.mubr.f32.gmra.mrb[0].mxu0 %v407
    %v602 = vpop.f32.mrb[0].mxu0
    %v603 = vadd.f32 0.0, %v602
    %v604 = vpop.f32.mrb[0].mxu0
    %605 = vmatprep.mubr.f32.mxu0 0.0
    %606 = vmatmul.mubr.f32.gmra.mrb[0].mxu0 %v408
    %v607 = vpop.f32.mrb[0].mxu0
    %v608 = vadd.f32 0.0, %v607
    %v609 = vpop.f32.mrb[0].mxu0
    %610 = vmatprep.mubr.f32.mxu0 0.0
    %611 = vmatmul.mubr.f32.gmra.mrb[0].mxu0 %v409
    %v612 = vpop.f32.mrb[0].mxu0
    %v613 = vadd.f32 0.0, %v612
    %v614 = vpop.f32.mrb[0].mxu0
    %615 = vmatprep.mubr.f32.mxu0 0.0
    %616 = vmatmul.mubr.f32.gmra.mrb[0].mxu0 %v410
    %v617 = vpop.f32.mrb[0].mxu0
    %v618 = vadd.f32 0.0, %v617
    %v619 = vpop.f32.mrb[0].mxu0
    %620 = vmatprep.mubr.f32.mxu0 0.0
    %621 = vmatmul.mubr.f32.gmra.mrb[0].mxu0 %v411
    %v622 = vpop.f32.mrb[0].mxu0
    %v623 = vadd.f32 0.0, %v622
    %v624 = vpop.f32.mrb[0].mxu0
    %625 = vmatprep.mubr.f32.mxu0 0.0
    %626 = vmatmul.mubr.f32.gmra.mrb[0].mxu0 %v412
    %v627 = vpop.f32.mrb[0].mxu0
    %v628 = vadd.f32 0.0, %v627
    %v629 = vpop.f32.mrb[0].mxu0
    %630 = vmatprep.mubr.f32.mxu0 0.0
    %631 = vmatmul.mubr.f32.gmra.mrb[0].mxu0 %v413
    %v632 = vpop.f32.mrb[0].mxu0
    %v633 = vadd.f32 0.0, %v632
    %v634 = vpop.f32.mrb[0].mxu0
    %635 = vmatprep.mubr.f32.mxu0 0.0
    %636 = vmatmul.mubr.f32.gmra.mrb[0].mxu0 %v414
    %v637 = vpop.f32.mrb[0].mxu0
    %v638 = vadd.f32 0.0, %v637
    %v639 = vpop.f32.mrb[0].mxu0
    %640 = vmatprep.mubr.f32.mxu0 0.0
    %641 = vmatmul.mubr.f32.gmra.mrb[0].mxu0 %v415
    %v642 = vpop.f32.mrb[0].mxu0
    %v643 = vadd.f32 0.0, %v642
    %v644 = vpop.f32.mrb[0].mxu0
    %645 = vmatprep.mubr.f32.mxu0 0.0
    %646 = vmatmul.mubr.f32.gmra.mrb[0].mxu0 %v416
    %v647 = vpop.f32.mrb[0].mxu0
    %v648 = vadd.f32 0.0, %v647
    %v649 = vpop.f32.mrb[0].mxu0
    %650 = vmatprep.mubr.f32.mxu0 0.0
    %651 = vmatmul.mubr.f32.gmra.mrb[0].mxu0 %v417
    %v652 = vpop.f32.mrb[0].mxu0
    %v653 = vadd.f32 0.0, %v652
    %v654 = vpop.f32.mrb[0].mxu0
    %655 = vmatprep.mubr.f32.mxu0 0.0
    %656 = vmatmul.mubr.f32.gmra.mrb[0].mxu0 %v418
    %v657 = vpop.f32.mrb[0].mxu0
    %v658 = vadd.f32 0.0, %v657
    %v659 = vpop.f32.mrb[0].mxu0
    %660 = vmatprep.mubr.f32.mxu0 0.0
    %661 = vmatmul.mubr.f32.gmra.mrb[0].mxu0 %v419
    %v662 = vpop.f32.mrb[0].mxu0
    %v663 = vadd.f32 0.0, %v662
    %v664 = vpop.f32.mrb[0].mxu0
    %665 = vmatprep.mubr.f32.mxu0 0.0
    %666 = vmatmul.mubr.f32.gmra.mrb[0].mxu0 %v420
    %v667 = vpop.f32.mrb[0].mxu0
    %v668 = vadd.f32 0.0, %v667
    %v669 = vpop.f32.mrb[0].mxu0
    %670 = vmatprep.mubr.f32.mxu0 0.0
    %671 = vmatmul.mubr.f32.gmra.mrb[0].mxu0 %v421
    %v672 = vpop.f32.mrb[0].mxu0
    %v673 = vadd.f32 0.0, %v672
    %v674 = vpop.f32.mrb[0].mxu0
    %675 = vmatprep.mubr.f32.mxu0 0.0
    %676 = vmatmul.mubr.f32.gmra.mrb[0].mxu0 %v422
    %v677 = vpop.f32.mrb[0].mxu0
    %v678 = vadd.f32 0.0, %v677
    %v679 = vpop.f32.mrb[0].mxu0
    %680 = vdwg.mxu0
    %v681 = vmax.f32 %v523, 0.0
    %v682 = vmax.f32 %v528, 0.0
    %v683 = vmax.f32 %v533, 0.0
    %v684 = vmax.f32 %v538, 0.0
    %v685 = vmax.f32 %v543, 0.0
    %v686 = vmax.f32 %v548, 0.0
    %v687 = vmax.f32 %v553, 0.0
    %v688 = vmax.f32 %v558, 0.0
    %v689 = vmax.f32 %v563, 0.0
    %v690 = vmax.f32 %v568, 0.0
    %v691 = vmax.f32 %v573, 0.0
    %v692 = vmax.f32 %v578, 0.0
    %v693 = vmax.f32 %v583, 0.0
    %v694 = vmax.f32 %v588, 0.0
    %v695 = vmax.f32 %v593, 0.0
    %v696 = vmax.f32 %v598, 0.0
    %v697 = vmax.f32 %v603, 0.0
    %v698 = vmax.f32 %v608, 0.0
    %v699 = vmax.f32 %v613, 0.0
    %v700 = vmax.f32 %v618, 0.0
    %v701 = vmax.f32 %v623, 0.0
    %v702 = vmax.f32 %v628, 0.0
    %v703 = vmax.f32 %v633, 0.0
    %v704 = vmax.f32 %v638, 0.0
    %v705 = vmax.f32 %v643, 0.0
    %v706 = vmax.f32 %v648, 0.0
    %v707 = vmax.f32 %v653, 0.0
    %v708 = vmax.f32 %v658, 0.0
    %v709 = vmax.f32 %v663, 0.0
    %v710 = vmax.f32 %v668, 0.0
    %v711 = vmax.f32 %v673, 0.0
    %v712 = vmax.f32 %v678, 0.0
    %713 = vmatprep.subr.mxu0 0.0
    %714 = vmatpush1.msra.mxu0 %v440
    %715 = vmatprep.subr.mxu0 0.0
    %716 = vmatpush1.msra.mxu0 %v441
    %717 = vmatprep.subr.mxu0 0.0
    %718 = vmatpush1.msra.mxu0 %v442
    %719 = vmatprep.subr.mxu0 0.0
    %720 = vmatpush1.msra.mxu0 %v443
    %721 = vmatprep.subr.mxu0 0.0
    %722 = vmatpush1.msra.mxu0 %v444
    %723 = vmatprep.subr.mxu0 0.0
    %724 = vmatpush1.msra.mxu0 %v445
    %725 = vmatprep.subr.mxu0 0.0
    %726 = vmatpush1.msra.mxu0 %v446
    %727 = vmatprep.subr.mxu0 0.0
    %728 = vmatpush1.msra.mxu0 %v447
    %729 = vmatprep.subr.mxu0 0.0
    %730 = vmatpush1.msra.mxu0 %v448
    %731 = vmatprep.subr.mxu0 0.0
    %732 = vmatpush1.msra.mxu0 %v449
    %733 = vmatprep.subr.mxu0 0.0
    %734 = vmatpush1.msra.mxu0 %v450
    %735 = vmatprep.subr.mxu0 0.0
    %736 = vmatpush1.msra.mxu0 %v451
    %737 = vmatprep.subr.mxu0 0.0
    %738 = vmatpush1.msra.mxu0 %v452
    %739 = vmatprep.subr.mxu0 0.0
    %740 = vmatpush1.msra.mxu0 %v453
    %741 = vmatprep.subr.mxu0 0.0
    %742 = vmatpush1.msra.mxu0 %v454
    %743 = vmatprep.subr.mxu0 0.0
    %744 = vmatpush1.msra.mxu0 %v455
    %745 = vmatprep.subr.mxu0 0.0
    %746 = vmatpush1.msra.mxu0 0.0
    %747 = vmatprep.subr.mxu0 0.0
    %748 = vmatpush1.msra.mxu0 0.0
    %749 = vmatprep.subr.mxu0 0.0
    %750 = vmatpush1.msra.mxu0 0.0
    %751 = vmatprep.subr.mxu0 0.0
    %752 = vmatpush1.msra.mxu0 0.0
    %753 = vmatprep.subr.mxu0 0.0
    %754 = vmatpush1.msra.mxu0 0.0
    %755 = vmatprep.subr.mxu0 0.0
    %756 = vmatpush1.msra.mxu0 0.0
    %757 = vmatprep.subr.mxu0 0.0
    %758 = vmatpush1.msra.mxu0 0.0
    %759 = vmatprep.subr.mxu0 0.0
    %760 = vmatpush1.msra.mxu0 0.0
    %761 = vmatprep.subr.mxu0 0.0
    %762 = vmatpush1.msra.mxu0 0.0
    %763 = vmatprep.subr.mxu0 0.0
    %764 = vmatpush1.msra.mxu0 0.0
    %765 = vmatprep.subr.mxu0 0.0
    %766 = vmatpush1.msra.mxu0 0.0
    %767 = vmatprep.subr.mxu0 0.0
    %768 = vmatpush1.msra.mxu0 0.0
    %769 = vmatprep.subr.mxu0 0.0
    %770 = vmatpush1.msra.mxu0 0.0
    %771 = vmatprep.subr.mxu0 0.0
    %772 = vmatpush1.msra.mxu0 0.0
    %773 = vmatprep.subr.mxu0 0.0
    %774 = vmatpush1.msra.mxu0 0.0
    %775 = vmatprep.subr.mxu0 0.0
    %776 = vmatpush1.msra.mxu0 0.0
    %777 = vmatprep.mubr.f32.mxu0 0.0
    %778 = vmatmul.mubr.f32.gmra.mrb[0].mxu0 %v681
    %v779 = vpop.f32.mrb[0].mxu0
    %v780 = vadd.f32 0.0, %v779
    %v781 = vpop.f32.mrb[0].mxu0
    %782 = vmatprep.mubr.f32.mxu0 0.0
    %783 = vmatmul.mubr.f32.gmra.mrb[0].mxu0 %v682
    %v784 = vpop.f32.mrb[0].mxu0
    %v785 = vadd.f32 0.0, %v784
    %v786 = vpop.f32.mrb[0].mxu0
    %787 = vmatprep.mubr.f32.mxu0 0.0
    %788 = vmatmul.mubr.f32.gmra.mrb[0].mxu0 %v683
    %v789 = vpop.f32.mrb[0].mxu0
    %v790 = vadd.f32 0.0, %v789
    %v791 = vpop.f32.mrb[0].mxu0
    %792 = vmatprep.mubr.f32.mxu0 0.0
    %793 = vmatmul.mubr.f32.gmra.mrb[0].mxu0 %v684
    %v794 = vpop.f32.mrb[0].mxu0
    %v795 = vadd.f32 0.0, %v794
    %v796 = vpop.f32.mrb[0].mxu0
    %797 = vmatprep.mubr.f32.mxu0 0.0
    %798 = vmatmul.mubr.f32.gmra.mrb[0].mxu0 %v685
    %v799 = vpop.f32.mrb[0].mxu0
    %v800 = vadd.f32 0.0, %v799
    %v801 = vpop.f32.mrb[0].mxu0
    %802 = vmatprep.mubr.f32.mxu0 0.0
    %803 = vmatmul.mubr.f32.gmra.mrb[0].mxu0 %v686
    %v804 = vpop.f32.mrb[0].mxu0
    %v805 = vadd.f32 0.0, %v804
    %v806 = vpop.f32.mrb[0].mxu0
    %807 = vmatprep.mubr.f32.mxu0 0.0
    %808 = vmatmul.mubr.f32.gmra.mrb[0].mxu0 %v687
    %v809 = vpop.f32.mrb[0].mxu0
    %v810 = vadd.f32 0.0, %v809
    %v811 = vpop.f32.mrb[0].mxu0
    %812 = vmatprep.mubr.f32.mxu0 0.0
    %813 = vmatmul.mubr.f32.gmra.mrb[0].mxu0 %v688
    %v814 = vpop.f32.mrb[0].mxu0
    %v815 = vadd.f32 0.0, %v814
    %v816 = vpop.f32.mrb[0].mxu0
    %817 = vmatprep.mubr.f32.mxu0 0.0
    %818 = vmatmul.mubr.f32.gmra.mrb[0].mxu0 %v689
    %v819 = vpop.f32.mrb[0].mxu0
    %v820 = vadd.f32 0.0, %v819
    %v821 = vpop.f32.mrb[0].mxu0
    %822 = vmatprep.mubr.f32.mxu0 0.0
    %823 = vmatmul.mubr.f32.gmra.mrb[0].mxu0 %v690
    %v824 = vpop.f32.mrb[0].mxu0
    %v825 = vadd.f32 0.0, %v824
    %v826 = vpop.f32.mrb[0].mxu0
    %827 = vmatprep.mubr.f32.mxu0 0.0
    %828 = vmatmul.mubr.f32.gmra.mrb[0].mxu0 %v691
    %v829 = vpop.f32.mrb[0].mxu0
    %v830 = vadd.f32 0.0, %v829
    %v831 = vpop.f32.mrb[0].mxu0
    %832 = vmatprep.mubr.f32.mxu0 0.0
    %833 = vmatmul.mubr.f32.gmra.mrb[0].mxu0 %v692
    %v834 = vpop.f32.mrb[0].mxu0
    %v835 = vadd.f32 0.0, %v834
    %v836 = vpop.f32.mrb[0].mxu0
    %837 = vmatprep.mubr.f32.mxu0 0.0
    %838 = vmatmul.mubr.f32.gmra.mrb[0].mxu0 %v693
    %v839 = vpop.f32.mrb[0].mxu0
    %v840 = vadd.f32 0.0, %v839
    %v841 = vpop.f32.mrb[0].mxu0
    %842 = vmatprep.mubr.f32.mxu0 0.0
    %843 = vmatmul.mubr.f32.gmra.mrb[0].mxu0 %v694
    %v844 = vpop.f32.mrb[0].mxu0
    %v845 = vadd.f32 0.0, %v844
    %v846 = vpop.f32.mrb[0].mxu0
    %847 = vmatprep.mubr.f32.mxu0 0.0
    %848 = vmatmul.mubr.f32.gmra.mrb[0].mxu0 %v695
    %v849 = vpop.f32.mrb[0].mxu0
    %v850 = vadd.f32 0.0, %v849
    %v851 = vpop.f32.mrb[0].mxu0
    %852 = vmatprep.mubr.f32.mxu0 0.0
    %853 = vmatmul.mubr.f32.gmra.mrb[0].mxu0 %v696
    %v854 = vpop.f32.mrb[0].mxu0
    %v855 = vadd.f32 0.0, %v854
    %v856 = vpop.f32.mrb[0].mxu0
    %857 = vmatprep.mubr.f32.mxu0 0.0
    %858 = vmatmul.mubr.f32.gmra.mrb[0].mxu0 %v697
    %v859 = vpop.f32.mrb[0].mxu0
    %v860 = vadd.f32 0.0, %v859
    %v861 = vpop.f32.mrb[0].mxu0
    %862 = vmatprep.mubr.f32.mxu0 0.0
    %863 = vmatmul.mubr.f32.gmra.mrb[0].mxu0 %v698
    %v864 = vpop.f32.mrb[0].mxu0
    %v865 = vadd.f32 0.0, %v864
    %v866 = vpop.f32.mrb[0].mxu0
    %867 = vmatprep.mubr.f32.mxu0 0.0
    %868 = vmatmul.mubr.f32.gmra.mrb[0].mxu0 %v699
    %v869 = vpop.f32.mrb[0].mxu0
    %v870 = vadd.f32 0.0, %v869
    %v871 = vpop.f32.mrb[0].mxu0
    %872 = vmatprep.mubr.f32.mxu0 0.0
    %873 = vmatmul.mubr.f32.gmra.mrb[0].mxu0 %v700
    %v874 = vpop.f32.mrb[0].mxu0
    %v875 = vadd.f32 0.0, %v874
    %v876 = vpop.f32.mrb[0].mxu0
    %877 = vmatprep.mubr.f32.mxu0 0.0
    %878 = vmatmul.mubr.f32.gmra.mrb[0].mxu0 %v701
    %v879 = vpop.f32.mrb[0].mxu0
    %v880 = vadd.f32 0.0, %v879
    %v881 = vpop.f32.mrb[0].mxu0
    %882 = vmatprep.mubr.f32.mxu0 0.0
    %883 = vmatmul.mubr.f32.gmra.mrb[0].mxu0 %v702
    %v884 = vpop.f32.mrb[0].mxu0
    %v885 = vadd.f32 0.0, %v884
    %v886 = vpop.f32.mrb[0].mxu0
    %887 = vmatprep.mubr.f32.mxu0 0.0
    %888 = vmatmul.mubr.f32.gmra.mrb[0].mxu0 %v703
    %v889 = vpop.f32.mrb[0].mxu0
    %v890 = vadd.f32 0.0, %v889
    %v891 = vpop.f32.mrb[0].mxu0
    %892 = vmatprep.mubr.f32.mxu0 0.0
    %893 = vmatmul.mubr.f32.gmra.mrb[0].mxu0 %v704
    %v894 = vpop.f32.mrb[0].mxu0
    %v895 = vadd.f32 0.0, %v894
    %v896 = vpop.f32.mrb[0].mxu0
    %897 = vmatprep.mubr.f32.mxu0 0.0
    %898 = vmatmul.mubr.f32.gmra.mrb[0].mxu0 %v705
    %v899 = vpop.f32.mrb[0].mxu0
    %v900 = vadd.f32 0.0, %v899
    %v901 = vpop.f32.mrb[0].mxu0
    %902 = vmatprep.mubr.f32.mxu0 0.0
    %903 = vmatmul.mubr.f32.gmra.mrb[0].mxu0 %v706
    %v904 = vpop.f32.mrb[0].mxu0
    %v905 = vadd.f32 0.0, %v904
    %v906 = vpop.f32.mrb[0].mxu0
    %907 = vmatprep.mubr.f32.mxu0 0.0
    %908 = vmatmul.mubr.f32.gmra.mrb[0].mxu0 %v707
    %v909 = vpop.f32.mrb[0].mxu0
    %v910 = vadd.f32 0.0, %v909
    %v911 = vpop.f32.mrb[0].mxu0
    %912 = vmatprep.mubr.f32.mxu0 0.0
    %913 = vmatmul.mubr.f32.gmra.mrb[0].mxu0 %v708
    %v914 = vpop.f32.mrb[0].mxu0
    %v915 = vadd.f32 0.0, %v914
    %v916 = vpop.f32.mrb[0].mxu0
    %917 = vmatprep.mubr.f32.mxu0 0.0
    %918 = vmatmul.mubr.f32.gmra.mrb[0].mxu0 %v709
    %v919 = vpop.f32.mrb[0].mxu0
    %v920 = vadd.f32 0.0, %v919
    %v921 = vpop.f32.mrb[0].mxu0
    %922 = vmatprep.mubr.f32.mxu0 0.0
    %923 = vmatmul.mubr.f32.gmra.mrb[0].mxu0 %v710
    %v924 = vpop.f32.mrb[0].mxu0
    %v925 = vadd.f32 0.0, %v924
    %v926 = vpop.f32.mrb[0].mxu0
    %927 = vmatprep.mubr.f32.mxu0 0.0
    %928 = vmatmul.mubr.f32.gmra.mrb[0].mxu0 %v711
    %v929 = vpop.f32.mrb[0].mxu0
    %v930 = vadd.f32 0.0, %v929
    %v931 = vpop.f32.mrb[0].mxu0
    %932 = vmatprep.mubr.f32.mxu0 0.0
    %933 = vmatmul.mubr.f32.gmra.mrb[0].mxu0 %v712
    %v934 = vpop.f32.mrb[0].mxu0
    %v935 = vadd.f32 0.0, %v934
    %v936 = vpop.f32.mrb[0].mxu0
    %937 = vdwg.mxu0
    %v938 = vmax.f32 %v780, 0.0
    %v939 = vmax.f32 %v785, 0.0
    %v940 = vmax.f32 %v790, 0.0
    %v941 = vmax.f32 %v795, 0.0
    %v942 = vmax.f32 %v800, 0.0
    %v943 = vmax.f32 %v805, 0.0
    %v944 = vmax.f32 %v810, 0.0
    %v945 = vmax.f32 %v815, 0.0
    %v946 = vmax.f32 %v820, 0.0
    %v947 = vmax.f32 %v825, 0.0
    %v948 = vmax.f32 %v830, 0.0
    %v949 = vmax.f32 %v835, 0.0
    %v950 = vmax.f32 %v840, 0.0
    %v951 = vmax.f32 %v845, 0.0
    %v952 = vmax.f32 %v850, 0.0
    %v953 = vmax.f32 %v855, 0.0
    %v954 = vmax.f32 %v860, 0.0
    %v955 = vmax.f32 %v865, 0.0
    %v956 = vmax.f32 %v870, 0.0
    %v957 = vmax.f32 %v875, 0.0
    %v958 = vmax.f32 %v880, 0.0
    %v959 = vmax.f32 %v885, 0.0
    %v960 = vmax.f32 %v890, 0.0
    %v961 = vmax.f32 %v895, 0.0
    %v962 = vmax.f32 %v900, 0.0
    %v963 = vmax.f32 %v905, 0.0
    %v964 = vmax.f32 %v910, 0.0
    %v965 = vmax.f32 %v915, 0.0
    %v966 = vmax.f32 %v920, 0.0
    %v967 = vmax.f32 %v925, 0.0
    %v968 = vmax.f32 %v930, 0.0
    %v969 = vmax.f32 %v935, 0.0
    %v970 = vadd.f32 %v391, %v938
    %v971 = vadd.f32 %v392, %v939
    %v972 = vadd.f32 %v393, %v940
    %v973 = vadd.f32 %v394, %v941
    %v974 = vadd.f32 %v395, %v942
    %v975 = vadd.f32 %v396, %v943
    %v976 = vadd.f32 %v397, %v944
    %v977 = vadd.f32 %v398, %v945
    %v978 = vadd.f32 %v399, %v946
    %v979 = vadd.f32 %v400, %v947
    %v980 = vadd.f32 %v401, %v948
    %v981 = vadd.f32 %v402, %v949
    %v982 = vadd.f32 %v403, %v950
    %v983 = vadd.f32 %v404, %v951
    %v984 = vadd.f32 %v405, %v952
    %v985 = vadd.f32 %v406, %v953
    %v986 = vadd.f32 %v407, %v954
    %v987 = vadd.f32 %v408, %v955
    %v988 = vadd.f32 %v409, %v956
    %v989 = vadd.f32 %v410, %v957
    %v990 = vadd.f32 %v411, %v958
    %v991 = vadd.f32 %v412, %v959
    %v992 = vadd.f32 %v413, %v960
    %v993 = vadd.f32 %v414, %v961
    %v994 = vadd.f32 %v415, %v962
    %v995 = vadd.f32 %v416, %v963
    %v996 = vadd.f32 %v417, %v964
    %v997 = vadd.f32 %v418, %v965
    %v998 = vadd.f32 %v419, %v966
    %v999 = vadd.f32 %v420, %v967
    %v1000 = vadd.f32 %v421, %v968
    %v1001 = vadd.f32 %v422, %v969
    %s1002 = scalar_lea.vmem [#allocation2], 256
    %v1003 = vld [vmem:[%s1002] sm:$0xff]
    %v1004 = vld [vmem:[%s1002 + $0x8] sm:$0xff]
    %v1005 = vld [vmem:[%s1002 + $0x10] sm:$0xff]
    %v1006 = vld [vmem:[%s1002 + $0x18] sm:$0xff]
    %v1007 = vld [vmem:[%s1002 + $0x20] sm:$0xff]
    %v1008 = vld [vmem:[%s1002 + $0x28] sm:$0xff]
    %v1009 = vld [vmem:[%s1002 + $0x30] sm:$0xff]
    %v1010 = vld [vmem:[%s1002 + $0x38] sm:$0xff]
    %v1011 = vld [vmem:[%s1002 + $0x40] sm:$0xff]
    %v1012 = vld [vmem:[%s1002 + $0x48] sm:$0xff]
    %v1013 = vld [vmem:[%s1002 + $0x50] sm:$0xff]
    %v1014 = vld [vmem:[%s1002 + $0x58] sm:$0xff]
    %v1015 = vld [vmem:[%s1002 + $0x60] sm:$0xff]
    %v1016 = vld [vmem:[%s1002 + $0x68] sm:$0xff]
    %v1017 = vld [vmem:[%s1002 + $0x70] sm:$0xff]
    %v1018 = vld [vmem:[%s1002 + $0x78] sm:$0xff]
    %s1019 = scalar_lea.vmem [#allocation2], 384
    %v1020 = vld [vmem:[%s1019] sm:$0xff]
    %v1021 = vld [vmem:[%s1019 + $0x8] sm:$0xff]
    %v1022 = vld [vmem:[%s1019 + $0x10] sm:$0xff]
    %v1023 = vld [vmem:[%s1019 + $0x18] sm:$0xff]
    %v1024 = vld [vmem:[%s1019 + $0x20] sm:$0xff]
    %v1025 = vld [vmem:[%s1019 + $0x28] sm:$0xff]
    %v1026 = vld [vmem:[%s1019 + $0x30] sm:$0xff]
    %v1027 = vld [vmem:[%s1019 + $0x38] sm:$0xff]
    %v1028 = vld [vmem:[%s1019 + $0x40] sm:$0xff]
    %v1029 = vld [vmem:[%s1019 + $0x48] sm:$0xff]
    %v1030 = vld [vmem:[%s1019 + $0x50] sm:$0xff]
    %v1031 = vld [vmem:[%s1019 + $0x58] sm:$0xff]
    %v1032 = vld [vmem:[%s1019 + $0x60] sm:$0xff]
    %v1033 = vld [vmem:[%s1019 + $0x68] sm:$0xff]
    %v1034 = vld [vmem:[%s1019 + $0x70] sm:$0xff]
    %v1035 = vld [vmem:[%s1019 + $0x78] sm:$0xff]
    %1036 = vmatprep.subr.mxu0 0.0
    %1037 = vmatpush1.msra.mxu0 %v1003
    %1038 = vmatprep.subr.mxu0 0.0
    %1039 = vmatpush1.msra.mxu0 %v1004
    %1040 = vmatprep.subr.mxu0 0.0
    %1041 = vmatpush1.msra.mxu0 %v1005
    %1042 = vmatprep.subr.mxu0 0.0
    %1043 = vmatpush1.msra.mxu0 %v1006
    %1044 = vmatprep.subr.mxu0 0.0
    %1045 = vmatpush1.msra.mxu0 %v1007
    %1046 = vmatprep.subr.mxu0 0.0
    %1047 = vmatpush1.msra.mxu0 %v1008
    %1048 = vmatprep.subr.mxu0 0.0
    %1049 = vmatpush1.msra.mxu0 %v1009
    %1050 = vmatprep.subr.mxu0 0.0
    %1051 = vmatpush1.msra.mxu0 %v1010
    %1052 = vmatprep.subr.mxu0 0.0
    %1053 = vmatpush1.msra.mxu0 %v1011
    %1054 = vmatprep.subr.mxu0 0.0
    %1055 = vmatpush1.msra.mxu0 %v1012
    %1056 = vmatprep.subr.mxu0 0.0
    %1057 = vmatpush1.msra.mxu0 %v1013
    %1058 = vmatprep.subr.mxu0 0.0
    %1059 = vmatpush1.msra.mxu0 %v1014
    %1060 = vmatprep.subr.mxu0 0.0
    %1061 = vmatpush1.msra.mxu0 %v1015
    %1062 = vmatprep.subr.mxu0 0.0
    %1063 = vmatpush1.msra.mxu0 %v1016
    %1064 = vmatprep.subr.mxu0 0.0
    %1065 = vmatpush1.msra.mxu0 %v1017
    %1066 = vmatprep.subr.mxu0 0.0
    %1067 = vmatpush1.msra.mxu0 %v1018
    %1068 = vmatprep.subr.mxu0 0.0
    %1069 = vmatpush1.msra.mxu0 0.0
    %1070 = vmatprep.subr.mxu0 0.0
    %1071 = vmatpush1.msra.mxu0 0.0
    %1072 = vmatprep.subr.mxu0 0.0
    %1073 = vmatpush1.msra.mxu0 0.0
    %1074 = vmatprep.subr.mxu0 0.0
    %1075 = vmatpush1.msra.mxu0 0.0
    %1076 = vmatprep.subr.mxu0 0.0
    %1077 = vmatpush1.msra.mxu0 0.0
    %1078 = vmatprep.subr.mxu0 0.0
    %1079 = vmatpush1.msra.mxu0 0.0
    %1080 = vmatprep.subr.mxu0 0.0
    %1081 = vmatpush1.msra.mxu0 0.0
    %1082 = vmatprep.subr.mxu0 0.0
    %1083 = vmatpush1.msra.mxu0 0.0
    %1084 = vmatprep.subr.mxu0 0.0
    %1085 = vmatpush1.msra.mxu0 0.0
    %1086 = vmatprep.subr.mxu0 0.0
    %1087 = vmatpush1.msra.mxu0 0.0
    %1088 = vmatprep.subr.mxu0 0.0
    %1089 = vmatpush1.msra.mxu0 0.0
    %1090 = vmatprep.subr.mxu0 0.0
    %1091 = vmatpush1.msra.mxu0 0.0
    %1092 = vmatprep.subr.mxu0 0.0
    %1093 = vmatpush1.msra.mxu0 0.0
    %1094 = vmatprep.subr.mxu0 0.0
    %1095 = vmatpush1.msra.mxu0 0.0
    %1096 = vmatprep.subr.mxu0 0.0
    %1097 = vmatpush1.msra.mxu0 0.0
    %1098 = vmatprep.subr.mxu0 0.0
    %1099 = vmatpush1.msra.mxu0 0.0
    %1100 = vmatprep.mubr.f32.mxu0 0.0
    %1101 = vmatmul.mubr.f32.gmra.mrb[0].mxu0 %v970
    %v1102 = vpop.f32.mrb[0].mxu0
    %v1103 = vadd.f32 0.0, %v1102
    %v1104 = vpop.f32.mrb[0].mxu0
    %1105 = vmatprep.mubr.f32.mxu0 0.0
    %1106 = vmatmul.mubr.f32.gmra.mrb[0].mxu0 %v971
    %v1107 = vpop.f32.mrb[0].mxu0
    %v1108 = vadd.f32 0.0, %v1107
    %v1109 = vpop.f32.mrb[0].mxu0
    %1110 = vmatprep.mubr.f32.mxu0 0.0
    %1111 = vmatmul.mubr.f32.gmra.mrb[0].mxu0 %v972
    %v1112 = vpop.f32.mrb[0].mxu0
    %v1113 = vadd.f32 0.0, %v1112
    %v1114 = vpop.f32.mrb[0].mxu0
    %1115 = vmatprep.mubr.f32.mxu0 0.0
    %1116 = vmatmul.mubr.f32.gmra.mrb[0].mxu0 %v973
    %v1117 = vpop.f32.mrb[0].mxu0
    %v1118 = vadd.f32 0.0, %v1117
    %v1119 = vpop.f32.mrb[0].mxu0
    %1120 = vmatprep.mubr.f32.mxu0 0.0
    %1121 = vmatmul.mubr.f32.gmra.mrb[0].mxu0 %v974
    %v1122 = vpop.f32.mrb[0].mxu0
    %v1123 = vadd.f32 0.0, %v1122
    %v1124 = vpop.f32.mrb[0].mxu0
    %1125 = vmatprep.mubr.f32.mxu0 0.0
    %1126 = vmatmul.mubr.f32.gmra.mrb[0].mxu0 %v975
    %v1127 = vpop.f32.mrb[0].mxu0
    %v1128 = vadd.f32 0.0, %v1127
    %v1129 = vpop.f32.mrb[0].mxu0
    %1130 = vmatprep.mubr.f32.mxu0 0.0
    %1131 = vmatmul.mubr.f32.gmra.mrb[0].mxu0 %v976
    %v1132 = vpop.f32.mrb[0].mxu0
    %v1133 = vadd.f32 0.0, %v1132
    %v1134 = vpop.f32.mrb[0].mxu0
    %1135 = vmatprep.mubr.f32.mxu0 0.0
    %1136 = vmatmul.mubr.f32.gmra.mrb[0].mxu0 %v977
    %v1137 = vpop.f32.mrb[0].mxu0
    %v1138 = vadd.f32 0.0, %v1137
    %v1139 = vpop.f32.mrb[0].mxu0
    %1140 = vmatprep.mubr.f32.mxu0 0.0
    %1141 = vmatmul.mubr.f32.gmra.mrb[0].mxu0 %v978
    %v1142 = vpop.f32.mrb[0].mxu0
    %v1143 = vadd.f32 0.0, %v1142
    %v1144 = vpop.f32.mrb[0].mxu0
    %1145 = vmatprep.mubr.f32.mxu0 0.0
    %1146 = vmatmul.mubr.f32.gmra.mrb[0].mxu0 %v979
    %v1147 = vpop.f32.mrb[0].mxu0
    %v1148 = vadd.f32 0.0, %v1147
    %v1149 = vpop.f32.mrb[0].mxu0
    %1150 = vmatprep.mubr.f32.mxu0 0.0
    %1151 = vmatmul.mubr.f32.gmra.mrb[0].mxu0 %v980
    %v1152 = vpop.f32.mrb[0].mxu0
    %v1153 = vadd.f32 0.0, %v1152
    %v1154 = vpop.f32.mrb[0].mxu0
    %1155 = vmatprep.mubr.f32.mxu0 0.0
    %1156 = vmatmul.mubr.f32.gmra.mrb[0].mxu0 %v981
    %v1157 = vpop.f32.mrb[0].mxu0
    %v1158 = vadd.f32 0.0, %v1157
    %v1159 = vpop.f32.mrb[0].mxu0
    %1160 = vmatprep.mubr.f32.mxu0 0.0
    %1161 = vmatmul.mubr.f32.gmra.mrb[0].mxu0 %v982
    %v1162 = vpop.f32.mrb[0].mxu0
    %v1163 = vadd.f32 0.0, %v1162
    %v1164 = vpop.f32.mrb[0].mxu0
    %1165 = vmatprep.mubr.f32.mxu0 0.0
    %1166 = vmatmul.mubr.f32.gmra.mrb[0].mxu0 %v983
    %v1167 = vpop.f32.mrb[0].mxu0
    %v1168 = vadd.f32 0.0, %v1167
    %v1169 = vpop.f32.mrb[0].mxu0
    %1170 = vmatprep.mubr.f32.mxu0 0.0
    %1171 = vmatmul.mubr.f32.gmra.mrb[0].mxu0 %v984
    %v1172 = vpop.f32.mrb[0].mxu0
    %v1173 = vadd.f32 0.0, %v1172
    %v1174 = vpop.f32.mrb[0].mxu0
    %1175 = vmatprep.mubr.f32.mxu0 0.0
    %1176 = vmatmul.mubr.f32.gmra.mrb[0].mxu0 %v985
    %v1177 = vpop.f32.mrb[0].mxu0
    %v1178 = vadd.f32 0.0, %v1177
    %v1179 = vpop.f32.mrb[0].mxu0
    %1180 = vmatprep.mubr.f32.mxu0 0.0
    %1181 = vmatmul.mubr.f32.gmra.mrb[0].mxu0 %v986
    %v1182 = vpop.f32.mrb[0].mxu0
    %v1183 = vadd.f32 0.0, %v1182
    %v1184 = vpop.f32.mrb[0].mxu0
    %1185 = vmatprep.mubr.f32.mxu0 0.0
    %1186 = vmatmul.mubr.f32.gmra.mrb[0].mxu0 %v987
    %v1187 = vpop.f32.mrb[0].mxu0
    %v1188 = vadd.f32 0.0, %v1187
    %v1189 = vpop.f32.mrb[0].mxu0
    %1190 = vmatprep.mubr.f32.mxu0 0.0
    %1191 = vmatmul.mubr.f32.gmra.mrb[0].mxu0 %v988
    %v1192 = vpop.f32.mrb[0].mxu0
    %v1193 = vadd.f32 0.0, %v1192
    %v1194 = vpop.f32.mrb[0].mxu0
    %1195 = vmatprep.mubr.f32.mxu0 0.0
    %1196 = vmatmul.mubr.f32.gmra.mrb[0].mxu0 %v989
    %v1197 = vpop.f32.mrb[0].mxu0
    %v1198 = vadd.f32 0.0, %v1197
    %v1199 = vpop.f32.mrb[0].mxu0
    %1200 = vmatprep.mubr.f32.mxu0 0.0
    %1201 = vmatmul.mubr.f32.gmra.mrb[0].mxu0 %v990
    %v1202 = vpop.f32.mrb[0].mxu0
    %v1203 = vadd.f32 0.0, %v1202
    %v1204 = vpop.f32.mrb[0].mxu0
    %1205 = vmatprep.mubr.f32.mxu0 0.0
    %1206 = vmatmul.mubr.f32.gmra.mrb[0].mxu0 %v991
    %v1207 = vpop.f32.mrb[0].mxu0
    %v1208 = vadd.f32 0.0, %v1207
    %v1209 = vpop.f32.mrb[0].mxu0
    %1210 = vmatprep.mubr.f32.mxu0 0.0
    %1211 = vmatmul.mubr.f32.gmra.mrb[0].mxu0 %v992
    %v1212 = vpop.f32.mrb[0].mxu0
    %v1213 = vadd.f32 0.0, %v1212
    %v1214 = vpop.f32.mrb[0].mxu0
    %1215 = vmatprep.mubr.f32.mxu0 0.0
    %1216 = vmatmul.mubr.f32.gmra.mrb[0].mxu0 %v993
    %v1217 = vpop.f32.mrb[0].mxu0
    %v1218 = vadd.f32 0.0, %v1217
    %v1219 = vpop.f32.mrb[0].mxu0
    %1220 = vmatprep.mubr.f32.mxu0 0.0
    %1221 = vmatmul.mubr.f32.gmra.mrb[0].mxu0 %v994
    %v1222 = vpop.f32.mrb[0].mxu0
    %v1223 = vadd.f32 0.0, %v1222
    %v1224 = vpop.f32.mrb[0].mxu0
    %1225 = vmatprep.mubr.f32.mxu0 0.0
    %1226 = vmatmul.mubr.f32.gmra.mrb[0].mxu0 %v995
    %v1227 = vpop.f32.mrb[0].mxu0
    %v1228 = vadd.f32 0.0, %v1227
    %v1229 = vpop.f32.mrb[0].mxu0
    %1230 = vmatprep.mubr.f32.mxu0 0.0
    %1231 = vmatmul.mubr.f32.gmra.mrb[0].mxu0 %v996
    %v1232 = vpop.f32.mrb[0].mxu0
    %v1233 = vadd.f32 0.0, %v1232
    %v1234 = vpop.f32.mrb[0].mxu0
    %1235 = vmatprep.mubr.f32.mxu0 0.0
    %1236 = vmatmul.mubr.f32.gmra.mrb[0].mxu0 %v997
    %v1237 = vpop.f32.mrb[0].mxu0
    %v1238 = vadd.f32 0.0, %v1237
    %v1239 = vpop.f32.mrb[0].mxu0
    %1240 = vmatprep.mubr.f32.mxu0 0.0
    %1241 = vmatmul.mubr.f32.gmra.mrb[0].mxu0 %v998
    %v1242 = vpop.f32.mrb[0].mxu0
    %v1243 = vadd.f32 0.0, %v1242
    %v1244 = vpop.f32.mrb[0].mxu0
    %1245 = vmatprep.mubr.f32.mxu0 0.0
    %1246 = vmatmul.mubr.f32.gmra.mrb[0].mxu0 %v999
    %v1247 = vpop.f32.mrb[0].mxu0
    %v1248 = vadd.f32 0.0, %v1247
    %v1249 = vpop.f32.mrb[0].mxu0
    %1250 = vmatprep.mubr.f32.mxu0 0.0
    %1251 = vmatmul.mubr.f32.gmra.mrb[0].mxu0 %v1000
    %v1252 = vpop.f32.mrb[0].mxu0
    %v1253 = vadd.f32 0.0, %v1252
    %v1254 = vpop.f32.mrb[0].mxu0
    %1255 = vmatprep.mubr.f32.mxu0 0.0
    %1256 = vmatmul.mubr.f32.gmra.mrb[0].mxu0 %v1001
    %v1257 = vpop.f32.mrb[0].mxu0
    %v1258 = vadd.f32 0.0, %v1257
    %v1259 = vpop.f32.mrb[0].mxu0
    %1260 = vdwg.mxu0
    %v1261 = vmax.f32 %v1103, 0.0
    %v1262 = vmax.f32 %v1108, 0.0
    %v1263 = vmax.f32 %v1113, 0.0
    %v1264 = vmax.f32 %v1118, 0.0
    %v1265 = vmax.f32 %v1123, 0.0
    %v1266 = vmax.f32 %v1128, 0.0
    %v1267 = vmax.f32 %v1133, 0.0
    %v1268 = vmax.f32 %v1138, 0.0
    %v1269 = vmax.f32 %v1143, 0.0
    %v1270 = vmax.f32 %v1148, 0.0
    %v1271 = vmax.f32 %v1153, 0.0
    %v1272 = vmax.f32 %v1158, 0.0
    %v1273 = vmax.f32 %v1163, 0.0
    %v1274 = vmax.f32 %v1168, 0.0
    %v1275 = vmax.f32 %v1173, 0.0
    %v1276 = vmax.f32 %v1178, 0.0
    %v1277 = vmax.f32 %v1183, 0.0
    %v1278 = vmax.f32 %v1188, 0.0
    %v1279 = vmax.f32 %v1193, 0.0
    %v1280 = vmax.f32 %v1198, 0.0
    %v1281 = vmax.f32 %v1203, 0.0
    %v1282 = vmax.f32 %v1208, 0.0
    %v1283 = vmax.f32 %v1213, 0.0
    %v1284 = vmax.f32 %v1218, 0.0
    %v1285 = vmax.f32 %v1223, 0.0
    %v1286 = vmax.f32 %v1228, 0.0
    %v1287 = vmax.f32 %v1233, 0.0
    %v1288 = vmax.f32 %v1238, 0.0
    %v1289 = vmax.f32 %v1243, 0.0
    %v1290 = vmax.f32 %v1248, 0.0
    %v1291 = vmax.f32 %v1253, 0.0
    %v1292 = vmax.f32 %v1258, 0.0
    %1293 = vmatprep.subr.mxu0 0.0
    %1294 = vmatpush1.msra.mxu0 %v1020
    %1295 = vmatprep.subr.mxu0 0.0
    %1296 = vmatpush1.msra.mxu0 %v1021
    %1297 = vmatprep.subr.mxu0 0.0
    %1298 = vmatpush1.msra.mxu0 %v1022
    %1299 = vmatprep.subr.mxu0 0.0
    %1300 = vmatpush1.msra.mxu0 %v1023
    %1301 = vmatprep.subr.mxu0 0.0
    %1302 = vmatpush1.msra.mxu0 %v1024
    %1303 = vmatprep.subr.mxu0 0.0
    %1304 = vmatpush1.msra.mxu0 %v1025
    %1305 = vmatprep.subr.mxu0 0.0
    %1306 = vmatpush1.msra.mxu0 %v1026
    %1307 = vmatprep.subr.mxu0 0.0
    %1308 = vmatpush1.msra.mxu0 %v1027
    %1309 = vmatprep.subr.mxu0 0.0
    %1310 = vmatpush1.msra.mxu0 %v1028
    %1311 = vmatprep.subr.mxu0 0.0
    %1312 = vmatpush1.msra.mxu0 %v1029
    %1313 = vmatprep.subr.mxu0 0.0
    %1314 = vmatpush1.msra.mxu0 %v1030
    %1315 = vmatprep.subr.mxu0 0.0
    %1316 = vmatpush1.msra.mxu0 %v1031
    %1317 = vmatprep.subr.mxu0 0.0
    %1318 = vmatpush1.msra.mxu0 %v1032
    %1319 = vmatprep.subr.mxu0 0.0
    %1320 = vmatpush1.msra.mxu0 %v1033
    %1321 = vmatprep.subr.mxu0 0.0
    %1322 = vmatpush1.msra.mxu0 %v1034
    %1323 = vmatprep.subr.mxu0 0.0
    %1324 = vmatpush1.msra.mxu0 %v1035
    %1325 = vmatprep.subr.mxu0 0.0
    %1326 = vmatpush1.msra.mxu0 0.0
    %1327 = vmatprep.subr.mxu0 0.0
    %1328 = vmatpush1.msra.mxu0 0.0
    %1329 = vmatprep.subr.mxu0 0.0
    %1330 = vmatpush1.msra.mxu0 0.0
    %1331 = vmatprep.subr.mxu0 0.0
    %1332 = vmatpush1.msra.mxu0 0.0
    %1333 = vmatprep.subr.mxu0 0.0
    %1334 = vmatpush1.msra.mxu0 0.0
    %1335 = vmatprep.subr.mxu0 0.0
    %1336 = vmatpush1.msra.mxu0 0.0
    %1337 = vmatprep.subr.mxu0 0.0
    %1338 = vmatpush1.msra.mxu0 0.0
    %1339 = vmatprep.subr.mxu0 0.0
    %1340 = vmatpush1.msra.mxu0 0.0
    %1341 = vmatprep.subr.mxu0 0.0
    %1342 = vmatpush1.msra.mxu0 0.0
    %1343 = vmatprep.subr.mxu0 0.0
    %1344 = vmatpush1.msra.mxu0 0.0
    %1345 = vmatprep.subr.mxu0 0.0
    %1346 = vmatpush1.msra.mxu0 0.0
    %1347 = vmatprep.subr.mxu0 0.0
    %1348 = vmatpush1.msra.mxu0 0.0
    %1349 = vmatprep.subr.mxu0 0.0
    %1350 = vmatpush1.msra.mxu0 0.0
    %1351 = vmatprep.subr.mxu0 0.0
    %1352 = vmatpush1.msra.mxu0 0.0
    %1353 = vmatprep.subr.mxu0 0.0
    %1354 = vmatpush1.msra.mxu0 0.0
    %1355 = vmatprep.subr.mxu0 0.0
    %1356 = vmatpush1.msra.mxu0 0.0
    %1357 = vmatprep.mubr.f32.mxu0 0.0
    %1358 = vmatmul.mubr.f32.gmra.mrb[0].mxu0 %v1261
    %v1359 = vpop.f32.mrb[0].mxu0
    %v1360 = vadd.f32 0.0, %v1359
    %v1361 = vpop.f32.mrb[0].mxu0
    %1362 = vmatprep.mubr.f32.mxu0 0.0
    %1363 = vmatmul.mubr.f32.gmra.mrb[0].mxu0 %v1262
    %v1364 = vpop.f32.mrb[0].mxu0
    %v1365 = vadd.f32 0.0, %v1364
    %v1366 = vpop.f32.mrb[0].mxu0
    %1367 = vmatprep.mubr.f32.mxu0 0.0
    %1368 = vmatmul.mubr.f32.gmra.mrb[0].mxu0 %v1263
    %v1369 = vpop.f32.mrb[0].mxu0
    %v1370 = vadd.f32 0.0, %v1369
    %v1371 = vpop.f32.mrb[0].mxu0
    %1372 = vmatprep.mubr.f32.mxu0 0.0
    %1373 = vmatmul.mubr.f32.gmra.mrb[0].mxu0 %v1264
    %v1374 = vpop.f32.mrb[0].mxu0
    %v1375 = vadd.f32 0.0, %v1374
    %v1376 = vpop.f32.mrb[0].mxu0
    %1377 = vmatprep.mubr.f32.mxu0 0.0
    %1378 = vmatmul.mubr.f32.gmra.mrb[0].mxu0 %v1265
    %v1379 = vpop.f32.mrb[0].mxu0
    %v1380 = vadd.f32 0.0, %v1379
    %v1381 = vpop.f32.mrb[0].mxu0
    %1382 = vmatprep.mubr.f32.mxu0 0.0
    %1383 = vmatmul.mubr.f32.gmra.mrb[0].mxu0 %v1266
    %v1384 = vpop.f32.mrb[0].mxu0
    %v1385 = vadd.f32 0.0, %v1384
    %v1386 = vpop.f32.mrb[0].mxu0
    %1387 = vmatprep.mubr.f32.mxu0 0.0
    %1388 = vmatmul.mubr.f32.gmra.mrb[0].mxu0 %v1267
    %v1389 = vpop.f32.mrb[0].mxu0
    %v1390 = vadd.f32 0.0, %v1389
    %v1391 = vpop.f32.mrb[0].mxu0
    %1392 = vmatprep.mubr.f32.mxu0 0.0
    %1393 = vmatmul.mubr.f32.gmra.mrb[0].mxu0 %v1268
    %v1394 = vpop.f32.mrb[0].mxu0
    %v1395 = vadd.f32 0.0, %v1394
    %v1396 = vpop.f32.mrb[0].mxu0
    %1397 = vmatprep.mubr.f32.mxu0 0.0
    %1398 = vmatmul.mubr.f32.gmra.mrb[0].mxu0 %v1269
    %v1399 = vpop.f32.mrb[0].mxu0
    %v1400 = vadd.f32 0.0, %v1399
    %v1401 = vpop.f32.mrb[0].mxu0
    %1402 = vmatprep.mubr.f32.mxu0 0.0
    %1403 = vmatmul.mubr.f32.gmra.mrb[0].mxu0 %v1270
    %v1404 = vpop.f32.mrb[0].mxu0
    %v1405 = vadd.f32 0.0, %v1404
    %v1406 = vpop.f32.mrb[0].mxu0
    %1407 = vmatprep.mubr.f32.mxu0 0.0
    %1408 = vmatmul.mubr.f32.gmra.mrb[0].mxu0 %v1271
    %v1409 = vpop.f32.mrb[0].mxu0
    %v1410 = vadd.f32 0.0, %v1409
    %v1411 = vpop.f32.mrb[0].mxu0
    %1412 = vmatprep.mubr.f32.mxu0 0.0
    %1413 = vmatmul.mubr.f32.gmra.mrb[0].mxu0 %v1272
    %v1414 = vpop.f32.mrb[0].mxu0
    %v1415 = vadd.f32 0.0, %v1414
    %v1416 = vpop.f32.mrb[0].mxu0
    %1417 = vmatprep.mubr.f32.mxu0 0.0
    %1418 = vmatmul.mubr.f32.gmra.mrb[0].mxu0 %v1273
    %v1419 = vpop.f32.mrb[0].mxu0
    %v1420 = vadd.f32 0.0, %v1419
    %v1421 = vpop.f32.mrb[0].mxu0
    %1422 = vmatprep.mubr.f32.mxu0 0.0
    %1423 = vmatmul.mubr.f32.gmra.mrb[0].mxu0 %v1274
    %v1424 = vpop.f32.mrb[0].mxu0
    %v1425 = vadd.f32 0.0, %v1424
    %v1426 = vpop.f32.mrb[0].mxu0
    %1427 = vmatprep.mubr.f32.mxu0 0.0
    %1428 = vmatmul.mubr.f32.gmra.mrb[0].mxu0 %v1275
    %v1429 = vpop.f32.mrb[0].mxu0
    %v1430 = vadd.f32 0.0, %v1429
    %v1431 = vpop.f32.mrb[0].mxu0
    %1432 = vmatprep.mubr.f32.mxu0 0.0
    %1433 = vmatmul.mubr.f32.gmra.mrb[0].mxu0 %v1276
    %v1434 = vpop.f32.mrb[0].mxu0
    %v1435 = vadd.f32 0.0, %v1434
    %v1436 = vpop.f32.mrb[0].mxu0
    %1437 = vmatprep.mubr.f32.mxu0 0.0
    %1438 = vmatmul.mubr.f32.gmra.mrb[0].mxu0 %v1277
    %v1439 = vpop.f32.mrb[0].mxu0
    %v1440 = vadd.f32 0.0, %v1439
    %v1441 = vpop.f32.mrb[0].mxu0
    %1442 = vmatprep.mubr.f32.mxu0 0.0
    %1443 = vmatmul.mubr.f32.gmra.mrb[0].mxu0 %v1278
    %v1444 = vpop.f32.mrb[0].mxu0
    %v1445 = vadd.f32 0.0, %v1444
    %v1446 = vpop.f32.mrb[0].mxu0
    %1447 = vmatprep.mubr.f32.mxu0 0.0
    %1448 = vmatmul.mubr.f32.gmra.mrb[0].mxu0 %v1279
    %v1449 = vpop.f32.mrb[0].mxu0
    %v1450 = vadd.f32 0.0, %v1449
    %v1451 = vpop.f32.mrb[0].mxu0
    %1452 = vmatprep.mubr.f32.mxu0 0.0
    %1453 = vmatmul.mubr.f32.gmra.mrb[0].mxu0 %v1280
    %v1454 = vpop.f32.mrb[0].mxu0
    %v1455 = vadd.f32 0.0, %v1454
    %v1456 = vpop.f32.mrb[0].mxu0
    %1457 = vmatprep.mubr.f32.mxu0 0.0
    %1458 = vmatmul.mubr.f32.gmra.mrb[0].mxu0 %v1281
    %v1459 = vpop.f32.mrb[0].mxu0
    %v1460 = vadd.f32 0.0, %v1459
    %v1461 = vpop.f32.mrb[0].mxu0
    %1462 = vmatprep.mubr.f32.mxu0 0.0
    %1463 = vmatmul.mubr.f32.gmra.mrb[0].mxu0 %v1282
    %v1464 = vpop.f32.mrb[0].mxu0
    %v1465 = vadd.f32 0.0, %v1464
    %v1466 = vpop.f32.mrb[0].mxu0
    %1467 = vmatprep.mubr.f32.mxu0 0.0
    %1468 = vmatmul.mubr.f32.gmra.mrb[0].mxu0 %v1283
    %v1469 = vpop.f32.mrb[0].mxu0
    %v1470 = vadd.f32 0.0, %v1469
    %v1471 = vpop.f32.mrb[0].mxu0
    %1472 = vmatprep.mubr.f32.mxu0 0.0
    %1473 = vmatmul.mubr.f32.gmra.mrb[0].mxu0 %v1284
    %v1474 = vpop.f32.mrb[0].mxu0
    %v1475 = vadd.f32 0.0, %v1474
    %v1476 = vpop.f32.mrb[0].mxu0
    %1477 = vmatprep.mubr.f32.mxu0 0.0
    %1478 = vmatmul.mubr.f32.gmra.mrb[0].mxu0 %v1285
    %v1479 = vpop.f32.mrb[0].mxu0
    %v1480 = vadd.f32 0.0, %v1479
    %v1481 = vpop.f32.mrb[0].mxu0
    %1482 = vmatprep.mubr.f32.mxu0 0.0
    %1483 = vmatmul.mubr.f32.gmra.mrb[0].mxu0 %v1286
    %v1484 = vpop.f32.mrb[0].mxu0
    %v1485 = vadd.f32 0.0, %v1484
    %v1486 = vpop.f32.mrb[0].mxu0
    %1487 = vmatprep.mubr.f32.mxu0 0.0
    %1488 = vmatmul.mubr.f32.gmra.mrb[0].mxu0 %v1287
    %v1489 = vpop.f32.mrb[0].mxu0
    %v1490 = vadd.f32 0.0, %v1489
    %v1491 = vpop.f32.mrb[0].mxu0
    %1492 = vmatprep.mubr.f32.mxu0 0.0
    %1493 = vmatmul.mubr.f32.gmra.mrb[0].mxu0 %v1288
    %v1494 = vpop.f32.mrb[0].mxu0
    %v1495 = vadd.f32 0.0, %v1494
    %v1496 = vpop.f32.mrb[0].mxu0
    %1497 = vmatprep.mubr.f32.mxu0 0.0
    %1498 = vmatmul.mubr.f32.gmra.mrb[0].mxu0 %v1289
    %v1499 = vpop.f32.mrb[0].mxu0
    %v1500 = vadd.f32 0.0, %v1499
    %v1501 = vpop.f32.mrb[0].mxu0
    %1502 = vmatprep.mubr.f32.mxu0 0.0
    %1503 = vmatmul.mubr.f32.gmra.mrb[0].mxu0 %v1290
    %v1504 = vpop.f32.mrb[0].mxu0
    %v1505 = vadd.f32 0.0, %v1504
    %v1506 = vpop.f32.mrb[0].mxu0
    %1507 = vmatprep.mubr.f32.mxu0 0.0
    %1508 = vmatmul.mubr.f32.gmra.mrb[0].mxu0 %v1291
    %v1509 = vpop.f32.mrb[0].mxu0
    %v1510 = vadd.f32 0.0, %v1509
    %v1511 = vpop.f32.mrb[0].mxu0
    %1512 = vmatprep.mubr.f32.mxu0 0.0
    %1513 = vmatmul.mubr.f32.gmra.mrb[0].mxu0 %v1292
    %v1514 = vpop.f32.mrb[0].mxu0
    %v1515 = vadd.f32 0.0, %v1514
    %v1516 = vpop.f32.mrb[0].mxu0
    %1517 = vdwg.mxu0
    %v1518 = vmax.f32 %v1360, 0.0
    %v1519 = vmax.f32 %v1365, 0.0
    %v1520 = vmax.f32 %v1370, 0.0
    %v1521 = vmax.f32 %v1375, 0.0
    %v1522 = vmax.f32 %v1380, 0.0
    %v1523 = vmax.f32 %v1385, 0.0
    %v1524 = vmax.f32 %v1390, 0.0
    %v1525 = vmax.f32 %v1395, 0.0
    %v1526 = vmax.f32 %v1400, 0.0
    %v1527 = vmax.f32 %v1405, 0.0
    %v1528 = vmax.f32 %v1410, 0.0
    %v1529 = vmax.f32 %v1415, 0.0
    %v1530 = vmax.f32 %v1420, 0.0
    %v1531 = vmax.f32 %v1425, 0.0
    %v1532 = vmax.f32 %v1430, 0.0
    %v1533 = vmax.f32 %v1435, 0.0
    %v1534 = vmax.f32 %v1440, 0.0
    %v1535 = vmax.f32 %v1445, 0.0
    %v1536 = vmax.f32 %v1450, 0.0
    %v1537 = vmax.f32 %v1455, 0.0
    %v1538 = vmax.f32 %v1460, 0.0
    %v1539 = vmax.f32 %v1465, 0.0
    %v1540 = vmax.f32 %v1470, 0.0
    %v1541 = vmax.f32 %v1475, 0.0
    %v1542 = vmax.f32 %v1480, 0.0
    %v1543 = vmax.f32 %v1485, 0.0
    %v1544 = vmax.f32 %v1490, 0.0
    %v1545 = vmax.f32 %v1495, 0.0
    %v1546 = vmax.f32 %v1500, 0.0
    %v1547 = vmax.f32 %v1505, 0.0
    %v1548 = vmax.f32 %v1510, 0.0
    %v1549 = vmax.f32 %v1515, 0.0
    %v1550 = vadd.f32 %v970, %v1518
    %v1551 = vadd.f32 %v971, %v1519
    %v1552 = vadd.f32 %v972, %v1520
    %v1553 = vadd.f32 %v973, %v1521
    %v1554 = vadd.f32 %v974, %v1522
    %v1555 = vadd.f32 %v975, %v1523
    %v1556 = vadd.f32 %v976, %v1524
    %v1557 = vadd.f32 %v977, %v1525
    %v1558 = vadd.f32 %v978, %v1526
    %v1559 = vadd.f32 %v979, %v1527
    %v1560 = vadd.f32 %v980, %v1528
    %v1561 = vadd.f32 %v981, %v1529
    %v1562 = vadd.f32 %v982, %v1530
    %v1563 = vadd.f32 %v983, %v1531
    %v1564 = vadd.f32 %v984, %v1532
    %v1565 = vadd.f32 %v985, %v1533
    %v1566 = vadd.f32 %v986, %v1534
    %v1567 = vadd.f32 %v987, %v1535
    %v1568 = vadd.f32 %v988, %v1536
    %v1569 = vadd.f32 %v989, %v1537
    %v1570 = vadd.f32 %v990, %v1538
    %v1571 = vadd.f32 %v991, %v1539
    %v1572 = vadd.f32 %v992, %v1540
    %v1573 = vadd.f32 %v993, %v1541
    %v1574 = vadd.f32 %v994, %v1542
    %v1575 = vadd.f32 %v995, %v1543
    %v1576 = vadd.f32 %v996, %v1544
    %v1577 = vadd.f32 %v997, %v1545
    %v1578 = vadd.f32 %v998, %v1546
    %v1579 = vadd.f32 %v999, %v1547
    %v1580 = vadd.f32 %v1000, %v1548
    %v1581 = vadd.f32 %v1001, %v1549
    %1582 = vst [vmem:[#allocation5] sm:$0xff] %v1550
    %1583 = vst [vmem:[#allocation5 + $0x8] sm:$0xff] %v1551
    %1584 = vst [vmem:[#allocation5 + $0x10] sm:$0xff] %v1552
    %1585 = vst [vmem:[#allocation5 + $0x18] sm:$0xff] %v1553
    %1586 = vst [vmem:[#allocation5 + $0x20] sm:$0xff] %v1554
    %1587 = vst [vmem:[#allocation5 + $0x28] sm:$0xff] %v1555
    %1588 = vst [vmem:[#allocation5 + $0x30] sm:$0xff] %v1556
    %1589 = vst [vmem:[#allocation5 + $0x38] sm:$0xff] %v1557
    %1590 = vst [vmem:[#allocation5 + $0x40] sm:$0xff] %v1558
    %1591 = vst [vmem:[#allocation5 + $0x48] sm:$0xff] %v1559
    %1592 = vst [vmem:[#allocation5 + $0x50] sm:$0xff] %v1560
    %1593 = vst [vmem:[#allocation5 + $0x58] sm:$0xff] %v1561
    %1594 = vst [vmem:[#allocation5 + $0x60] sm:$0xff] %v1562
    %1595 = vst [vmem:[#allocation5 + $0x68] sm:$0xff] %v1563
    %1596 = vst [vmem:[#allocation5 + $0x70] sm:$0xff] %v1564
    %1597 = vst [vmem:[#allocation5 + $0x78] sm:$0xff] %v1565
    %1598 = vst [vmem:[#allocation5 + $0x80] sm:$0xff] %v1566
    %1599 = vst [vmem:[#allocation5 + $0x88] sm:$0xff] %v1567
    %1600 = vst [vmem:[#allocation5 + $0x90] sm:$0xff] %v1568
    %1601 = vst [vmem:[#allocation5 + $0x98] sm:$0xff] %v1569
    %1602 = vst [vmem:[#allocation5 + $0xa0] sm:$0xff] %v1570
    %1603 = vst [vmem:[#allocation5 + $0xa8] sm:$0xff] %v1571
    %1604 = vst [vmem:[#allocation5 + $0xb0] sm:$0xff] %v1572
    %1605 = vst [vmem:[#allocation5 + $0xb8] sm:$0xff] %v1573
    %1606 = vst [vmem:[#allocation5 + $0xc0] sm:$0xff] %v1574
    %1607 = vst [vmem:[#allocation5 + $0xc8] sm:$0xff] %v1575
    %1608 = vst [vmem:[#allocation5 + $0xd0] sm:$0xff] %v1576
    %1609 = vst [vmem:[#allocation5 + $0xd8] sm:$0xff] %v1577
    %1610 = vst [vmem:[#allocation5 + $0xe0] sm:$0xff] %v1578
    %1611 = vst [vmem:[#allocation5 + $0xe8] sm:$0xff] %v1579
    %1612 = vst [vmem:[#allocation5 + $0xf0] sm:$0xff] %v1580
    %1613 = vst [vmem:[#allocation5 + $0xf8] sm:$0xff] %v1581
    // Predicated region
    $region18: #{tpu_custom_call.1} parent=1 // pred_check
      _
    $region19: #{tpu_custom_call.1} parent=1 // pred_check_branch
      %1615 = sbr.rel (0) target = $region21
    $region20: #{tpu_custom_call.1} parent=1 // pred_region
      %s1617 = ssub.s32 4096, 4096
      %1618 = vsyncadd [#allocation4], %s1617
      %s1619 = sshll.u32 [#allocation5], 4
      %s1620 = int_to_ptr.vmem [resolvable:$true] %s1619
      %1625 = dma.vmem_to_hbm [thread:$0]  %s1620, 4096, %s3, [#allocation4], 128, 128, 8
    $region21: #{tpu_custom_call.1} parent=1 // pred_fallthru
      _
    // Predicated region
    $region22: #{tpu_custom_call.1} parent=1 // pred_check
      _
    $region23: #{tpu_custom_call.1} parent=1 // pred_check_branch
      %1627 = sbr.rel (0) target = $region25
    $region24: #{tpu_custom_call.1} parent=1 // pred_region
      %1628 = dma.done [#allocation4], 4096
    $region25: #{tpu_custom_call.1} parent=1 // pred_fallthru
      _
    %1629 = vsyncpa [#allocation3], 1
    %1630 = vsyncpa [#allocation4], 1

</llo_original>
